<compile_context>
chip_gen: v5e
topology: v5e:2x2
jax: 0.10.0
libtpu: 0.0.40
codegen_flags: <defaults>
</compile_context>

<pallas_src>
import jax
import jax.numpy as jnp
from jax.experimental import pallas as pl
from jax.experimental.pallas import tpu as pltpu

# ------------------------- configuration (small, synthetic) -------------------
DESCRIPTOR_NC = 128      # descriptor_nc
MAPPING_LAYERS = 2       # mapping_layers
MLP_LAYERS = 2           # mlp_layers
DIRECTIONS = 128         # directions (motion_dim)
COEFF_NC = 64            # channels actually used (if_use_pose=False -> driving[:, :64])
SEQ_LEN = 32             # temporal length; must be > 6 + 6*MAPPING_LAYERS
BATCH = 2

LEAKY_SLOPE = 0.1


def _leaky(x):
    return jnp.where(x > 0, x, LEAKY_SLOPE * x)


# ---------------------------------- kernel ------------------------------------
def make_kernel(B, L0, mapping_layers, mlp_layers):
    DIR = DIRECTIONS

    def kernel(*refs):
        it = iter(refs)
        xcol_ref = next(it)            # (B, L0, 7*Cin) bf16  (im2col'ed first-conv input)
        wf_ref = next(it)              # (7*Cin, d)     bf16
        bf_ref = next(it)              # (1, d)         f32
        w_enc, b_enc = [], []
        for _ in range(mapping_layers):
            w_enc.append(next(it))     # (3, d, d)      bf16
            b_enc.append(next(it))     # (1, d)         f32
        wm, bm = [], []
        for _ in range(mlp_layers):
            wm.append(next(it))        # (d, d)         bf16
            bm.append(next(it))        # (1, d)         f32
        wfeat_hbm = next(it)           # (d, 14*DIR)    bf16  (HBM / ANY; 14-way add folded in)
        bfeat_ref = next(it)           # (1, 14*DIR)    f32
        qt_hbm = next(it)              # (d, 512)       bf16  (HBM / ANY; Q.T un-fused)
        feat_out_ref = next(it)        # (B, 14*DIR)    f32
        dirs_out_ref = next(it)        # (14*B, 512)    f32   (j-major rows)
        wfeat_vmem = next(it)          # VMEM scratch (d, 14*DIR) bf16
        qt_vmem = next(it)             # VMEM scratch (d, 512)    bf16
        sem = next(it)                 # DMA semaphores (2,)

        # ---- prefetch epilogue weights; overlap with MappingNet compute ------
        cp_feat = pltpu.make_async_copy(wfeat_hbm, wfeat_vmem, sem.at[0])
        cp_qt = pltpu.make_async_copy(qt_hbm, qt_vmem, sem.at[1])
        cp_feat.start()
        cp_qt.start()

        # ---- MappingNet: first conv (one im2col matmul per batch) ------------
        outs = []
        for b in range(B):
            o = jnp.dot(xcol_ref[b], wf_ref[...],
                        preferred_element_type=jnp.float32) + bf_ref[...]   # (L0, d) f32
            outs.append(o)

        # ---- dilated (k=3, dil=3) encoder convs: 3 accumulated dots + residual
        L = L0
        for i in range(mapping_layers):
            Ln = L - 6
            new_outs = []
            for b in range(B):
                y = _leaky(outs[b]).astype(jnp.bfloat16)                    # (L, d)
                acc = b_enc[i][...]                                         # (1, d) f32
                for k in range(3):
                    acc = acc + jnp.dot(y[3 * k:3 * k + Ln, :], w_enc[i][k],
                                        preferred_element_type=jnp.float32)
                new_outs.append(acc + outs[b][3:3 + Ln, :])                 # conv + residual
            outs = new_outs
            L = Ln

        # ---- AdaptiveAvgPool1d(1) per batch (f32) -----------------------------
        feat = jnp.concatenate(
            [jnp.mean(o, axis=0, keepdims=True) for o in outs], axis=0)     # (B, d)

        # ---- mapping_Refine with short-cut -------------------------------------
        # feat = Refine[-2:](feat + Refine[:-2](feat))
        t = feat
        for j in range(mlp_layers):
            t = jnp.dot(t.astype(jnp.bfloat16), wm[j][...],
                        preferred_element_type=jnp.float32) + bm[j][...]
            if j < mlp_layers - 1:
                t = _leaky(t)
        h = _leaky(feat + t).astype(jnp.bfloat16)                           # (B, d)

        # ---- epilogue: wait for prefetched weights, two lane-dense matmuls ----
        cp_feat.wait()
        cp_qt.wait()

        feat_flat = jnp.dot(h, wfeat_vmem[...],
                            preferred_element_type=jnp.float32) + bfeat_ref[...]  # (B, 14*DIR)
        feat_out_ref[...] = feat_flat

        # repack (B, 14*DIR) -> (14*B, DIR) (j-major) so the dirs matmul has M=14*B
        feat14 = jnp.concatenate(
            [feat_flat[:, j * DIR:(j + 1) * DIR] for j in range(14)], axis=0)     # (14*B, DIR)
        dirs_out_ref[...] = jnp.dot(feat14.astype(jnp.bfloat16), qt_vmem[...],
                                    preferred_element_type=jnp.float32)           # (14*B, 512)

    return kernel


# ------------------------- one-time parameter preparation ----------------------
def prepare_params(params):
    """QR + 14-way output fold + bf16 casts. Call once; amortized across forwards."""
    d, DIR = DESCRIPTOR_NC, DIRECTIONS
    # TODO(synk): torch.linalg.qr has no Pallas equivalent; done host-side in JAX,
    # once, and its Q.T passed as a small (128x512) bf16 kernel input.
    Q, _ = jnp.linalg.qr(params["dir_weight"].astype(jnp.float32) + 1e-8)   # (512, DIR)
    qt = Q.T                                                                # (DIR, 512)

    w_out, b_out = params["w_out"], params["b_out"]                         # (d,15*DIR),(1,15*DIR)
    w0, b0 = w_out[:, :DIR], b_out[:, :DIR]
    W_feat = jnp.concatenate(
        [w0 + w_out[:, (j + 1) * DIR:(j + 2) * DIR] for j in range(14)], axis=1)  # (d, 14*DIR)
    b_feat = jnp.concatenate(
        [b0 + b_out[:, (j + 1) * DIR:(j + 2) * DIR] for j in range(14)], axis=1)  # (1, 14*DIR)

    prep = {
        "wf": params["w_first"].reshape(7 * COEFF_NC, d).astype(jnp.bfloat16),
        "bf": params["b_first"].astype(jnp.float32),
        "W_feat": W_feat.astype(jnp.bfloat16),
        "b_feat": b_feat.astype(jnp.float32),
        "qt": qt.astype(jnp.bfloat16),
    }
    for i in range(MAPPING_LAYERS):
        prep[f"we{i}"] = params[f"w_enc{i}"].astype(jnp.bfloat16)           # (3, d, d)
        prep[f"be{i}"] = params[f"b_enc{i}"].astype(jnp.float32)
    for j in range(MLP_LAYERS):
        prep[f"wm{j}"] = params[f"wm{j}"].astype(jnp.bfloat16)
        prep[f"bm{j}"] = params[f"bm{j}"].astype(jnp.float32)
    return prep


# --------------------------------- wrapper -------------------------------------
@jax.jit
def video_codebook_forward(driving, prep):
    """driving: (B, C>=64, T) float32 in PyTorch NCL layout."""
    B, _, T = driving.shape
    L0 = T - 6
    d, DIR = DESCRIPTOR_NC, DIRECTIONS

    # layout plumbing: channels-last + im2col of the k=7 conv (kept 3-D per batch).
    x = jnp.transpose(driving[:, :COEFF_NC, :], (0, 2, 1))                  # (B, T, 64)
    xcol = jnp.concatenate([x[:, k:k + L0, :] for k in range(7)], axis=-1)  # (B, L0, 448)
    xcol = xcol.astype(jnp.bfloat16)

    inputs = [xcol, prep["wf"], prep["bf"]]
    for i in range(MAPPING_LAYERS):
        inputs += [prep[f"we{i}"], prep[f"be{i}"]]
    for j in range(MLP_LAYERS):
        inputs += [prep[f"wm{j}"], prep[f"bm{j}"]]
    inputs += [prep["W_feat"], prep["b_feat"], prep["qt"]]

    vmem = pl.BlockSpec(memory_space=pltpu.MemorySpace.VMEM)
    anymem = pl.BlockSpec(memory_space=pl.ANY)
    in_specs = [vmem] * len(inputs)
    in_specs[-3] = anymem   # W_feat stays in HBM; prefetched in-kernel
    in_specs[-1] = anymem   # qt stays in HBM; prefetched in-kernel

    feat_flat, dirs_jm = pl.pallas_call(
        make_kernel(B, L0, MAPPING_LAYERS, MLP_LAYERS),
        out_shape=(jax.ShapeDtypeStruct((B, 14 * DIR), jnp.float32),
                   jax.ShapeDtypeStruct((14 * B, 512), jnp.float32)),
        in_specs=in_specs,
        out_specs=(vmem, vmem),
        scratch_shapes=[pltpu.VMEM((d, 14 * DIR), jnp.bfloat16),
                        pltpu.VMEM((d, 512), jnp.bfloat16),
                        pltpu.SemaphoreType.DMA((2,))],
    )(*inputs)

    feat = feat_flat.reshape(B, 14, DIR)
    dirs = dirs_jm.reshape(14, B, 512).transpose(1, 0, 2)
    # forward returns (None, directions, feat) for if_plus_scaling=False
    return None, dirs, feat


# ------------------------------ parameter init ---------------------------------
def init_params(key):
    keys = iter(jax.random.split(key, 16))
    s = 0.1
    p = {}
    p["w_first"] = s * jax.random.normal(next(keys), (7, COEFF_NC, DESCRIPTOR_NC), jnp.float32)
    p["b_first"] = s * jax.random.normal(next(keys), (1, DESCRIPTOR_NC), jnp.float32)
    for i in range(MAPPING_LAYERS):
        p[f"w_enc{i}"] = s * jax.random.normal(next(keys), (3, DESCRIPTOR_NC, DESCRIPTOR_NC), jnp.float32)
        p[f"b_enc{i}"] = s * jax.random.normal(next(keys), (1, DESCRIPTOR_NC), jnp.float32)
    for j in range(MLP_LAYERS):
        p[f"wm{j}"] = s * jax.random.normal(next(keys), (DESCRIPTOR_NC, DESCRIPTOR_NC), jnp.float32)
        p[f"bm{j}"] = s * jax.random.normal(next(keys), (1, DESCRIPTOR_NC), jnp.float32)
    p["w_out"] = s * jax.random.normal(next(keys), (DESCRIPTOR_NC, 15 * DIRECTIONS), jnp.float32)
    p["b_out"] = s * jax.random.normal(next(keys), (1, 15 * DIRECTIONS), jnp.float32)
    p["dir_weight"] = jax.random.normal(next(keys), (512, DIRECTIONS), jnp.float32)
    return p


# ----------------------------- pure-JAX reference (f32) ------------------------
def reference_forward(driving, params):
    B = driving.shape[0]
    x = jnp.transpose(driving[:, :64, :], (0, 2, 1))
    L = x.shape[1] - 6
    out = sum(jnp.einsum("blc,cd->bld", x[:, k:k + L], params["w_first"][k])
              for k in range(7)) + params["b_first"][None]
    for i in range(MAPPING_LAYERS):
        y = jnp.where(out > 0, out, LEAKY_SLOPE * out)
        Lnew = L - 6
        conv = sum(jnp.einsum("blc,cd->bld", y[:, 3 * k:3 * k + Lnew], params[f"w_enc{i}"][k])
                   for k in range(3)) + params[f"b_enc{i}"][None]
        out = conv + out[:, 3:L - 3]
        L = Lnew
    feat = jnp.mean(out, axis=1)
    t = feat
    for j in range(MLP_LAYERS):
        t = t @ params[f"wm{j}"] + params[f"bm{j}"]
        if j < MLP_LAYERS - 1:
            t = jnp.where(t > 0, t, LEAKY_SLOPE * t)
    h = feat + t
    h = jnp.where(h > 0, h, LEAKY_SLOPE * h)
    f = (h @ params["w_out"] + params["b_out"]).reshape(B, 15, DIRECTIONS)
    feat14 = f[:, :1] + f[:, 1:]
    Q, _ = jnp.linalg.qr(params["dir_weight"] + 1e-8)
    dirs = (feat14.reshape(B * 14, DIRECTIONS) @ Q.T).reshape(B, 14, 512)
    return None, dirs, feat14


# ----------------------------------- main ---------------------------------------
if __name__ == "__main__":
    key = jax.random.PRNGKey(0)
    pkey, dkey = jax.random.split(key)
    params = init_params(pkey)
    # driving in PyTorch NCL layout (extra pose channels are sliced off, as in forward)
    driving = jax.random.normal(dkey, (BATCH, 70, SEQ_LEN), jnp.float32)

    prep = prepare_params(params)   # one-time: QR + 14-way output fold + bf16 casts
    _, dirs, feat = video_codebook_forward(driving, prep)
    jax.block_until_ready((dirs, feat))

    _, dirs_ref, feat_ref = reference_forward(driving, params)

    def rel_err(a, b):
        return float(jnp.max(jnp.abs(a - b)) / (jnp.max(jnp.abs(b)) + 1e-6))

    assert dirs.shape == (BATCH, 14, 512) and feat.shape == (BATCH, 14, DIRECTIONS)
    # normalized max-error check (bf16 matmul operands, f32 accumulation)
    assert rel_err(feat, feat_ref) < 3e-2, rel_err(feat, feat_ref)
    assert rel_err(dirs, dirs_ref) < 3e-2, rel_err(dirs, dirs_ref)
    print("KERNEL_OK")
</pallas_src>

<mosaic_0001>
module attributes {stable_mosaic.version = 11 : i64} {
  func.func @kernel(%arg0: memref<2x26x448xbf16, #tpu.memory_space<vmem>>, %arg1: memref<448x128xbf16, #tpu.memory_space<vmem>>, %arg2: memref<1x128xf32, #tpu.memory_space<vmem>>, %arg3: memref<3x128x128xbf16, #tpu.memory_space<vmem>>, %arg4: memref<1x128xf32, #tpu.memory_space<vmem>>, %arg5: memref<3x128x128xbf16, #tpu.memory_space<vmem>>, %arg6: memref<1x128xf32, #tpu.memory_space<vmem>>, %arg7: memref<128x128xbf16, #tpu.memory_space<vmem>>, %arg8: memref<1x128xf32, #tpu.memory_space<vmem>>, %arg9: memref<128x128xbf16, #tpu.memory_space<vmem>>, %arg10: memref<1x128xf32, #tpu.memory_space<vmem>>, %arg11: memref<128x1792xbf16, #tpu.memory_space<any>>, %arg12: memref<1x1792xf32, #tpu.memory_space<vmem>>, %arg13: memref<128x512xbf16, #tpu.memory_space<any>>, %arg14: memref<2x1792xf32, #tpu.memory_space<vmem>>, %arg15: memref<28x512xf32, #tpu.memory_space<vmem>>, %arg16: memref<128x1792xbf16, #tpu.memory_space<vmem>>, %arg17: memref<128x512xbf16, #tpu.memory_space<vmem>>, %arg18: memref<2x!tpu.dma_semaphore, #tpu.memory_space<semaphore_mem>>) attributes {dimension_semantics = [], scalar_prefetch = 0 : i64, scratch_operands = 3 : i64, tpu.core_type = #tpu.core_type<tc>} {
    %c0_i32 = arith.constant 0 : i32
    %0 = tpu.memref_slice %arg18[%c0_i32] : memref<2x!tpu.dma_semaphore, #tpu.memory_space<semaphore_mem>> -> memref<1x!tpu.dma_semaphore, #tpu.memory_space<semaphore_mem>>
    %1 = tpu.memref_squeeze %0 : memref<1x!tpu.dma_semaphore, #tpu.memory_space<semaphore_mem>> -> memref<!tpu.dma_semaphore, #tpu.memory_space<semaphore_mem>>
    tpu.enqueue_dma source(%arg11 : memref<128x1792xbf16, #tpu.memory_space<any>>) target(%arg16 : memref<128x1792xbf16, #tpu.memory_space<vmem>>) target_semaphore(%1 : memref<!tpu.dma_semaphore, #tpu.memory_space<semaphore_mem>>)
    %c1_i32 = arith.constant 1 : i32
    %2 = tpu.memref_slice %arg18[%c1_i32] : memref<2x!tpu.dma_semaphore, #tpu.memory_space<semaphore_mem>> -> memref<1x!tpu.dma_semaphore, #tpu.memory_space<semaphore_mem>>
    %3 = tpu.memref_squeeze %2 : memref<1x!tpu.dma_semaphore, #tpu.memory_space<semaphore_mem>> -> memref<!tpu.dma_semaphore, #tpu.memory_space<semaphore_mem>>
    tpu.enqueue_dma source(%arg13 : memref<128x512xbf16, #tpu.memory_space<any>>) target(%arg17 : memref<128x512xbf16, #tpu.memory_space<vmem>>) target_semaphore(%3 : memref<!tpu.dma_semaphore, #tpu.memory_space<semaphore_mem>>)
    %c0 = arith.constant 0 : index
    %c0_0 = arith.constant 0 : index
    %c0_1 = arith.constant 0 : index
    %4 = vector.load %arg0[%c0, %c0_0, %c0_1] : memref<2x26x448xbf16, #tpu.memory_space<vmem>>, vector<1x26x448xbf16>
    %5 = vector.shape_cast %4 : vector<1x26x448xbf16> to vector<26x448xbf16>
    %c0_2 = arith.constant 0 : index
    %c0_3 = arith.constant 0 : index
    %6 = vector.load %arg1[%c0_2, %c0_3] : memref<448x128xbf16, #tpu.memory_space<vmem>>, vector<448x128xbf16>
    %cst = arith.constant dense<0.000000e+00> : vector<26x128xf32>
    %7 = tpu.matmul %5, %6, %cst {dimension_numbers = #tpu.dot_dimension_numbers<[1], [0], [0], [1], [0, 0, 1, 1], [], []>} : vector<26x448xbf16>, vector<448x128xbf16>, vector<26x128xf32> -> vector<26x128xf32>
    %c0_4 = arith.constant 0 : index
    %c0_5 = arith.constant 0 : index
    %8 = vector.load %arg2[%c0_4, %c0_5] : memref<1x128xf32, #tpu.memory_space<vmem>>, vector<1x128xf32>
    %9 = vector.broadcast %8 : vector<1x128xf32> to vector<26x128xf32>
    %10 = arith.addf %7, %9 : vector<26x128xf32>
    %c1 = arith.constant 1 : index
    %c0_6 = arith.constant 0 : index
    %c0_7 = arith.constant 0 : index
    %11 = vector.load %arg0[%c1, %c0_6, %c0_7] : memref<2x26x448xbf16, #tpu.memory_space<vmem>>, vector<1x26x448xbf16>
    %12 = vector.shape_cast %11 : vector<1x26x448xbf16> to vector<26x448xbf16>
    %c0_8 = arith.constant 0 : index
    %c0_9 = arith.constant 0 : index
    %13 = vector.load %arg1[%c0_8, %c0_9] : memref<448x128xbf16, #tpu.memory_space<vmem>>, vector<448x128xbf16>
    %cst_10 = arith.constant dense<0.000000e+00> : vector<26x128xf32>
    %14 = tpu.matmul %12, %13, %cst_10 {dimension_numbers = #tpu.dot_dimension_numbers<[1], [0], [0], [1], [0, 0, 1, 1], [], []>} : vector<26x448xbf16>, vector<448x128xbf16>, vector<26x128xf32> -> vector<26x128xf32>
    %c0_11 = arith.constant 0 : index
    %c0_12 = arith.constant 0 : index
    %15 = vector.load %arg2[%c0_11, %c0_12] : memref<1x128xf32, #tpu.memory_space<vmem>>, vector<1x128xf32>
    %16 = vector.broadcast %15 : vector<1x128xf32> to vector<26x128xf32>
    %17 = arith.addf %14, %16 : vector<26x128xf32>
    %cst_13 = arith.constant 0.000000e+00 : f32
    %18 = vector.broadcast %cst_13 : f32 to vector<26x128xf32>
    %19 = arith.cmpf ogt, %10, %18 : vector<26x128xf32>
    %cst_14 = arith.constant 1.000000e-01 : f32
    %20 = vector.broadcast %cst_14 : f32 to vector<26x128xf32>
    %21 = arith.mulf %20, %10 : vector<26x128xf32>
    %22 = arith.select %19, %10, %21 : vector<26x128xi1>, vector<26x128xf32>
    %23 = arith.truncf %22 : vector<26x128xf32> to vector<26x128xbf16>
    %c0_15 = arith.constant 0 : index
    %c0_16 = arith.constant 0 : index
    %24 = vector.load %arg4[%c0_15, %c0_16] : memref<1x128xf32, #tpu.memory_space<vmem>>, vector<1x128xf32>
    %25 = vector.extract_strided_slice %23 {offsets = [0, 0], sizes = [20, 128], strides = [1, 1]} : vector<26x128xbf16> to vector<20x128xbf16>
    %c0_17 = arith.constant 0 : index
    %c0_18 = arith.constant 0 : index
    %c0_19 = arith.constant 0 : index
    %26 = vector.load %arg3[%c0_17, %c0_18, %c0_19] : memref<3x128x128xbf16, #tpu.memory_space<vmem>>, vector<1x128x128xbf16>
    %27 = vector.shape_cast %26 : vector<1x128x128xbf16> to vector<128x128xbf16>
    %cst_20 = arith.constant dense<0.000000e+00> : vector<20x128xf32>
    %28 = tpu.matmul %25, %27, %cst_20 {dimension_numbers = #tpu.dot_dimension_numbers<[1], [0], [0], [1], [0, 0, 1, 1], [], []>} : vector<20x128xbf16>, vector<128x128xbf16>, vector<20x128xf32> -> vector<20x128xf32>
    %29 = vector.broadcast %24 : vector<1x128xf32> to vector<20x128xf32>
    %30 = arith.addf %29, %28 : vector<20x128xf32>
    %31 = vector.extract_strided_slice %23 {offsets = [3, 0], sizes = [20, 128], strides = [1, 1]} : vector<26x128xbf16> to vector<20x128xbf16>
    %c1_21 = arith.constant 1 : index
    %c0_22 = arith.constant 0 : index
    %c0_23 = arith.constant 0 : index
    %32 = vector.load %arg3[%c1_21, %c0_22, %c0_23] : memref<3x128x128xbf16, #tpu.memory_space<vmem>>, vector<1x128x128xbf16>
    %33 = vector.shape_cast %32 : vector<1x128x128xbf16> to vector<128x128xbf16>
    %cst_24 = arith.constant dense<0.000000e+00> : vector<20x128xf32>
    %34 = tpu.matmul %31, %33, %cst_24 {dimension_numbers = #tpu.dot_dimension_numbers<[1], [0], [0], [1], [0, 0, 1, 1], [], []>} : vector<20x128xbf16>, vector<128x128xbf16>, vector<20x128xf32> -> vector<20x128xf32>
    %35 = arith.addf %30, %34 : vector<20x128xf32>
    %36 = vector.extract_strided_slice %23 {offsets = [6, 0], sizes = [20, 128], strides = [1, 1]} : vector<26x128xbf16> to vector<20x128xbf16>
    %c2 = arith.constant 2 : index
    %c0_25 = arith.constant 0 : index
    %c0_26 = arith.constant 0 : index
    %37 = vector.load %arg3[%c2, %c0_25, %c0_26] : memref<3x128x128xbf16, #tpu.memory_space<vmem>>, vector<1x128x128xbf16>
    %38 = vector.shape_cast %37 : vector<1x128x128xbf16> to vector<128x128xbf16>
    %cst_27 = arith.constant dense<0.000000e+00> : vector<20x128xf32>
    %39 = tpu.matmul %36, %38, %cst_27 {dimension_numbers = #tpu.dot_dimension_numbers<[1], [0], [0], [1], [0, 0, 1, 1], [], []>} : vector<20x128xbf16>, vector<128x128xbf16>, vector<20x128xf32> -> vector<20x128xf32>
    %40 = arith.addf %35, %39 : vector<20x128xf32>
    %41 = vector.extract_strided_slice %10 {offsets = [3, 0], sizes = [20, 128], strides = [1, 1]} : vector<26x128xf32> to vector<20x128xf32>
    %42 = arith.addf %40, %41 : vector<20x128xf32>
    %cst_28 = arith.constant 0.000000e+00 : f32
    %43 = vector.broadcast %cst_28 : f32 to vector<26x128xf32>
    %44 = arith.cmpf ogt, %17, %43 : vector<26x128xf32>
    %cst_29 = arith.constant 1.000000e-01 : f32
    %45 = vector.broadcast %cst_29 : f32 to vector<26x128xf32>
    %46 = arith.mulf %45, %17 : vector<26x128xf32>
    %47 = arith.select %44, %17, %46 : vector<26x128xi1>, vector<26x128xf32>
    %48 = arith.truncf %47 : vector<26x128xf32> to vector<26x128xbf16>
    %c0_30 = arith.constant 0 : index
    %c0_31 = arith.constant 0 : index
    %49 = vector.load %arg4[%c0_30, %c0_31] : memref<1x128xf32, #tpu.memory_space<vmem>>, vector<1x128xf32>
    %50 = vector.extract_strided_slice %48 {offsets = [0, 0], sizes = [20, 128], strides = [1, 1]} : vector<26x128xbf16> to vector<20x128xbf16>
    %c0_32 = arith.constant 0 : index
    %c0_33 = arith.constant 0 : index
    %c0_34 = arith.constant 0 : index
    %51 = vector.load %arg3[%c0_32, %c0_33, %c0_34] : memref<3x128x128xbf16, #tpu.memory_space<vmem>>, vector<1x128x128xbf16>
    %52 = vector.shape_cast %51 : vector<1x128x128xbf16> to vector<128x128xbf16>
    %cst_35 = arith.constant dense<0.000000e+00> : vector<20x128xf32>
    %53 = tpu.matmul %50, %52, %cst_35 {dimension_numbers = #tpu.dot_dimension_numbers<[1], [0], [0], [1], [0, 0, 1, 1], [], []>} : vector<20x128xbf16>, vector<128x128xbf16>, vector<20x128xf32> -> vector<20x128xf32>
    %54 = vector.broadcast %49 : vector<1x128xf32> to vector<20x128xf32>
    %55 = arith.addf %54, %53 : vector<20x128xf32>
    %56 = vector.extract_strided_slice %48 {offsets = [3, 0], sizes = [20, 128], strides = [1, 1]} : vector<26x128xbf16> to vector<20x128xbf16>
    %c1_36 = arith.constant 1 : index
    %c0_37 = arith.constant 0 : index
    %c0_38 = arith.constant 0 : index
    %57 = vector.load %arg3[%c1_36, %c0_37, %c0_38] : memref<3x128x128xbf16, #tpu.memory_space<vmem>>, vector<1x128x128xbf16>
    %58 = vector.shape_cast %57 : vector<1x128x128xbf16> to vector<128x128xbf16>
    %cst_39 = arith.constant dense<0.000000e+00> : vector<20x128xf32>
    %59 = tpu.matmul %56, %58, %cst_39 {dimension_numbers = #tpu.dot_dimension_numbers<[1], [0], [0], [1], [0, 0, 1, 1], [], []>} : vector<20x128xbf16>, vector<128x128xbf16>, vector<20x128xf32> -> vector<20x128xf32>
    %60 = arith.addf %55, %59 : vector<20x128xf32>
    %61 = vector.extract_strided_slice %48 {offsets = [6, 0], sizes = [20, 128], strides = [1, 1]} : vector<26x128xbf16> to vector<20x128xbf16>
    %c2_40 = arith.constant 2 : index
    %c0_41 = arith.constant 0 : index
    %c0_42 = arith.constant 0 : index
    %62 = vector.load %arg3[%c2_40, %c0_41, %c0_42] : memref<3x128x128xbf16, #tpu.memory_space<vmem>>, vector<1x128x128xbf16>
    %63 = vector.shape_cast %62 : vector<1x128x128xbf16> to vector<128x128xbf16>
    %cst_43 = arith.constant dense<0.000000e+00> : vector<20x128xf32>
    %64 = tpu.matmul %61, %63, %cst_43 {dimension_numbers = #tpu.dot_dimension_numbers<[1], [0], [0], [1], [0, 0, 1, 1], [], []>} : vector<20x128xbf16>, vector<128x128xbf16>, vector<20x128xf32> -> vector<20x128xf32>
    %65 = arith.addf %60, %64 : vector<20x128xf32>
    %66 = vector.extract_strided_slice %17 {offsets = [3, 0], sizes = [20, 128], strides = [1, 1]} : vector<26x128xf32> to vector<20x128xf32>
    %67 = arith.addf %65, %66 : vector<20x128xf32>
    %cst_44 = arith.constant 0.000000e+00 : f32
    %68 = vector.broadcast %cst_44 : f32 to vector<20x128xf32>
    %69 = arith.cmpf ogt, %42, %68 : vector<20x128xf32>
    %cst_45 = arith.constant 1.000000e-01 : f32
    %70 = vector.broadcast %cst_45 : f32 to vector<20x128xf32>
    %71 = arith.mulf %70, %42 : vector<20x128xf32>
    %72 = arith.select %69, %42, %71 : vector<20x128xi1>, vector<20x128xf32>
    %73 = arith.truncf %72 : vector<20x128xf32> to vector<20x128xbf16>
    %c0_46 = arith.constant 0 : index
    %c0_47 = arith.constant 0 : index
    %74 = vector.load %arg6[%c0_46, %c0_47] : memref<1x128xf32, #tpu.memory_space<vmem>>, vector<1x128xf32>
    %75 = vector.extract_strided_slice %73 {offsets = [0, 0], sizes = [14, 128], strides = [1, 1]} : vector<20x128xbf16> to vector<14x128xbf16>
    %c0_48 = arith.constant 0 : index
    %c0_49 = arith.constant 0 : index
    %c0_50 = arith.constant 0 : index
    %76 = vector.load %arg5[%c0_48, %c0_49, %c0_50] : memref<3x128x128xbf16, #tpu.memory_space<vmem>>, vector<1x128x128xbf16>
    %77 = vector.shape_cast %76 : vector<1x128x128xbf16> to vector<128x128xbf16>
    %cst_51 = arith.constant dense<0.000000e+00> : vector<14x128xf32>
    %78 = tpu.matmul %75, %77, %cst_51 {dimension_numbers = #tpu.dot_dimension_numbers<[1], [0], [0], [1], [0, 0, 1, 1], [], []>} : vector<14x128xbf16>, vector<128x128xbf16>, vector<14x128xf32> -> vector<14x128xf32>
    %79 = vector.broadcast %74 : vector<1x128xf32> to vector<14x128xf32>
    %80 = arith.addf %79, %78 : vector<14x128xf32>
    %81 = vector.extract_strided_slice %73 {offsets = [3, 0], sizes = [14, 128], strides = [1, 1]} : vector<20x128xbf16> to vector<14x128xbf16>
    %c1_52 = arith.constant 1 : index
    %c0_53 = arith.constant 0 : index
    %c0_54 = arith.constant 0 : index
    %82 = vector.load %arg5[%c1_52, %c0_53, %c0_54] : memref<3x128x128xbf16, #tpu.memory_space<vmem>>, vector<1x128x128xbf16>
    %83 = vector.shape_cast %82 : vector<1x128x128xbf16> to vector<128x128xbf16>
    %cst_55 = arith.constant dense<0.000000e+00> : vector<14x128xf32>
    %84 = tpu.matmul %81, %83, %cst_55 {dimension_numbers = #tpu.dot_dimension_numbers<[1], [0], [0], [1], [0, 0, 1, 1], [], []>} : vector<14x128xbf16>, vector<128x128xbf16>, vector<14x128xf32> -> vector<14x128xf32>
    %85 = arith.addf %80, %84 : vector<14x128xf32>
    %86 = vector.extract_strided_slice %73 {offsets = [6, 0], sizes = [14, 128], strides = [1, 1]} : vector<20x128xbf16> to vector<14x128xbf16>
    %c2_56 = arith.constant 2 : index
    %c0_57 = arith.constant 0 : index
    %c0_58 = arith.constant 0 : index
    %87 = vector.load %arg5[%c2_56, %c0_57, %c0_58] : memref<3x128x128xbf16, #tpu.memory_space<vmem>>, vector<1x128x128xbf16>
    %88 = vector.shape_cast %87 : vector<1x128x128xbf16> to vector<128x128xbf16>
    %cst_59 = arith.constant dense<0.000000e+00> : vector<14x128xf32>
    %89 = tpu.matmul %86, %88, %cst_59 {dimension_numbers = #tpu.dot_dimension_numbers<[1], [0], [0], [1], [0, 0, 1, 1], [], []>} : vector<14x128xbf16>, vector<128x128xbf16>, vector<14x128xf32> -> vector<14x128xf32>
    %90 = arith.addf %85, %89 : vector<14x128xf32>
    %91 = vector.extract_strided_slice %42 {offsets = [3, 0], sizes = [14, 128], strides = [1, 1]} : vector<20x128xf32> to vector<14x128xf32>
    %92 = arith.addf %90, %91 : vector<14x128xf32>
    %cst_60 = arith.constant 0.000000e+00 : f32
    %93 = vector.broadcast %cst_60 : f32 to vector<20x128xf32>
    %94 = arith.cmpf ogt, %67, %93 : vector<20x128xf32>
    %cst_61 = arith.constant 1.000000e-01 : f32
    %95 = vector.broadcast %cst_61 : f32 to vector<20x128xf32>
    %96 = arith.mulf %95, %67 : vector<20x128xf32>
    %97 = arith.select %94, %67, %96 : vector<20x128xi1>, vector<20x128xf32>
    %98 = arith.truncf %97 : vector<20x128xf32> to vector<20x128xbf16>
    %c0_62 = arith.constant 0 : index
    %c0_63 = arith.constant 0 : index
    %99 = vector.load %arg6[%c0_62, %c0_63] : memref<1x128xf32, #tpu.memory_space<vmem>>, vector<1x128xf32>
    %100 = vector.extract_strided_slice %98 {offsets = [0, 0], sizes = [14, 128], strides = [1, 1]} : vector<20x128xbf16> to vector<14x128xbf16>
    %c0_64 = arith.constant 0 : index
    %c0_65 = arith.constant 0 : index
    %c0_66 = arith.constant 0 : index
    %101 = vector.load %arg5[%c0_64, %c0_65, %c0_66] : memref<3x128x128xbf16, #tpu.memory_space<vmem>>, vector<1x128x128xbf16>
    %102 = vector.shape_cast %101 : vector<1x128x128xbf16> to vector<128x128xbf16>
    %cst_67 = arith.constant dense<0.000000e+00> : vector<14x128xf32>
    %103 = tpu.matmul %100, %102, %cst_67 {dimension_numbers = #tpu.dot_dimension_numbers<[1], [0], [0], [1], [0, 0, 1, 1], [], []>} : vector<14x128xbf16>, vector<128x128xbf16>, vector<14x128xf32> -> vector<14x128xf32>
    %104 = vector.broadcast %99 : vector<1x128xf32> to vector<14x128xf32>
    %105 = arith.addf %104, %103 : vector<14x128xf32>
    %106 = vector.extract_strided_slice %98 {offsets = [3, 0], sizes = [14, 128], strides = [1, 1]} : vector<20x128xbf16> to vector<14x128xbf16>
    %c1_68 = arith.constant 1 : index
    %c0_69 = arith.constant 0 : index
    %c0_70 = arith.constant 0 : index
    %107 = vector.load %arg5[%c1_68, %c0_69, %c0_70] : memref<3x128x128xbf16, #tpu.memory_space<vmem>>, vector<1x128x128xbf16>
    %108 = vector.shape_cast %107 : vector<1x128x128xbf16> to vector<128x128xbf16>
    %cst_71 = arith.constant dense<0.000000e+00> : vector<14x128xf32>
    %109 = tpu.matmul %106, %108, %cst_71 {dimension_numbers = #tpu.dot_dimension_numbers<[1], [0], [0], [1], [0, 0, 1, 1], [], []>} : vector<14x128xbf16>, vector<128x128xbf16>, vector<14x128xf32> -> vector<14x128xf32>
    %110 = arith.addf %105, %109 : vector<14x128xf32>
    %111 = vector.extract_strided_slice %98 {offsets = [6, 0], sizes = [14, 128], strides = [1, 1]} : vector<20x128xbf16> to vector<14x128xbf16>
    %c2_72 = arith.constant 2 : index
    %c0_73 = arith.constant 0 : index
    %c0_74 = arith.constant 0 : index
    %112 = vector.load %arg5[%c2_72, %c0_73, %c0_74] : memref<3x128x128xbf16, #tpu.memory_space<vmem>>, vector<1x128x128xbf16>
    %113 = vector.shape_cast %112 : vector<1x128x128xbf16> to vector<128x128xbf16>
    %cst_75 = arith.constant dense<0.000000e+00> : vector<14x128xf32>
    %114 = tpu.matmul %111, %113, %cst_75 {dimension_numbers = #tpu.dot_dimension_numbers<[1], [0], [0], [1], [0, 0, 1, 1], [], []>} : vector<14x128xbf16>, vector<128x128xbf16>, vector<14x128xf32> -> vector<14x128xf32>
    %115 = arith.addf %110, %114 : vector<14x128xf32>
    %116 = vector.extract_strided_slice %67 {offsets = [3, 0], sizes = [14, 128], strides = [1, 1]} : vector<20x128xf32> to vector<14x128xf32>
    %117 = arith.addf %115, %116 : vector<14x128xf32>
    %cst_76 = arith.constant dense<0.000000e+00> : vector<128xf32>
    %118 = vector.multi_reduction <add>, %92, %cst_76 [0] : vector<14x128xf32> to vector<128xf32>
    %119 = vector.shape_cast %118 : vector<128xf32> to vector<1x128xf32>
    %cst_77 = arith.constant 1.400000e+01 : f32
    %120 = vector.broadcast %cst_77 : f32 to vector<1x128xf32>
    %121 = arith.divf %119, %120 : vector<1x128xf32>
    %cst_78 = arith.constant dense<0.000000e+00> : vector<128xf32>
    %122 = vector.multi_reduction <add>, %117, %cst_78 [0] : vector<14x128xf32> to vector<128xf32>
    %123 = vector.shape_cast %122 : vector<128xf32> to vector<1x128xf32>
    %cst_79 = arith.constant 1.400000e+01 : f32
    %124 = vector.broadcast %cst_79 : f32 to vector<1x128xf32>
    %125 = arith.divf %123, %124 : vector<1x128xf32>
    %126 = tpu.concatenate %121, %125 in 0 : vector<1x128xf32>, vector<1x128xf32> -> vector<2x128xf32>
    %127 = arith.truncf %126 : vector<2x128xf32> to vector<2x128xbf16>
    %c0_80 = arith.constant 0 : index
    %c0_81 = arith.constant 0 : index
    %128 = vector.load %arg7[%c0_80, %c0_81] : memref<128x128xbf16, #tpu.memory_space<vmem>>, vector<128x128xbf16>
    %cst_82 = arith.constant dense<0.000000e+00> : vector<2x128xf32>
    %129 = tpu.matmul %127, %128, %cst_82 {dimension_numbers = #tpu.dot_dimension_numbers<[1], [0], [0], [1], [0, 0, 1, 1], [], []>} : vector<2x128xbf16>, vector<128x128xbf16>, vector<2x128xf32> -> vector<2x128xf32>
    %c0_83 = arith.constant 0 : index
    %c0_84 = arith.constant 0 : index
    %130 = vector.load %arg8[%c0_83, %c0_84] : memref<1x128xf32, #tpu.memory_space<vmem>>, vector<1x128xf32>
    %131 = vector.broadcast %130 : vector<1x128xf32> to vector<2x128xf32>
    %132 = arith.addf %129, %131 : vector<2x128xf32>
    %cst_85 = arith.constant 0.000000e+00 : f32
    %133 = vector.broadcast %cst_85 : f32 to vector<2x128xf32>
    %134 = arith.cmpf ogt, %132, %133 : vector<2x128xf32>
    %cst_86 = arith.constant 1.000000e-01 : f32
    %135 = vector.broadcast %cst_86 : f32 to vector<2x128xf32>
    %136 = arith.mulf %135, %132 : vector<2x128xf32>
    %137 = arith.select %134, %132, %136 : vector<2x128xi1>, vector<2x128xf32>
    %138 = arith.truncf %137 : vector<2x128xf32> to vector<2x128xbf16>
    %c0_87 = arith.constant 0 : index
    %c0_88 = arith.constant 0 : index
    %139 = vector.load %arg9[%c0_87, %c0_88] : memref<128x128xbf16, #tpu.memory_space<vmem>>, vector<128x128xbf16>
    %cst_89 = arith.constant dense<0.000000e+00> : vector<2x128xf32>
    %140 = tpu.matmul %138, %139, %cst_89 {dimension_numbers = #tpu.dot_dimension_numbers<[1], [0], [0], [1], [0, 0, 1, 1], [], []>} : vector<2x128xbf16>, vector<128x128xbf16>, vector<2x128xf32> -> vector<2x128xf32>
    %c0_90 = arith.constant 0 : index
    %c0_91 = arith.constant 0 : index
    %141 = vector.load %arg10[%c0_90, %c0_91] : memref<1x128xf32, #tpu.memory_space<vmem>>, vector<1x128xf32>
    %142 = vector.broadcast %141 : vector<1x128xf32> to vector<2x128xf32>
    %143 = arith.addf %140, %142 : vector<2x128xf32>
    %144 = arith.addf %126, %143 : vector<2x128xf32>
    %cst_92 = arith.constant 0.000000e+00 : f32
    %145 = vector.broadcast %cst_92 : f32 to vector<2x128xf32>
    %146 = arith.cmpf ogt, %144, %145 : vector<2x128xf32>
    %cst_93 = arith.constant 1.000000e-01 : f32
    %147 = vector.broadcast %cst_93 : f32 to vector<2x128xf32>
    %148 = arith.mulf %147, %144 : vector<2x128xf32>
    %149 = arith.select %146, %144, %148 : vector<2x128xi1>, vector<2x128xf32>
    %150 = arith.truncf %149 : vector<2x128xf32> to vector<2x128xbf16>
    %c0_i32_94 = arith.constant 0 : i32
    %151 = tpu.memref_slice %arg18[%c0_i32_94] : memref<2x!tpu.dma_semaphore, #tpu.memory_space<semaphore_mem>> -> memref<1x!tpu.dma_semaphore, #tpu.memory_space<semaphore_mem>>
    %152 = tpu.memref_squeeze %151 : memref<1x!tpu.dma_semaphore, #tpu.memory_space<semaphore_mem>> -> memref<!tpu.dma_semaphore, #tpu.memory_space<semaphore_mem>>
    tpu.wait_dma2 semaphore(%152 : memref<!tpu.dma_semaphore, #tpu.memory_space<semaphore_mem>>) src(%arg11 : memref<128x1792xbf16, #tpu.memory_space<any>>) dst(%arg16 : memref<128x1792xbf16, #tpu.memory_space<vmem>>)
    %c1_i32_95 = arith.constant 1 : i32
    %153 = tpu.memref_slice %arg18[%c1_i32_95] : memref<2x!tpu.dma_semaphore, #tpu.memory_space<semaphore_mem>> -> memref<1x!tpu.dma_semaphore, #tpu.memory_space<semaphore_mem>>
    %154 = tpu.memref_squeeze %153 : memref<1x!tpu.dma_semaphore, #tpu.memory_space<semaphore_mem>> -> memref<!tpu.dma_semaphore, #tpu.memory_space<semaphore_mem>>
    tpu.wait_dma2 semaphore(%154 : memref<!tpu.dma_semaphore, #tpu.memory_space<semaphore_mem>>) src(%arg13 : memref<128x512xbf16, #tpu.memory_space<any>>) dst(%arg17 : memref<128x512xbf16, #tpu.memory_space<vmem>>)
    %c0_96 = arith.constant 0 : index
    %c0_97 = arith.constant 0 : index
    %155 = vector.load %arg16[%c0_96, %c0_97] : memref<128x1792xbf16, #tpu.memory_space<vmem>>, vector<128x1792xbf16>
    %cst_98 = arith.constant dense<0.000000e+00> : vector<2x1792xf32>
    %156 = tpu.matmul %150, %155, %cst_98 {dimension_numbers = #tpu.dot_dimension_numbers<[1], [0], [0], [1], [0, 0, 1, 1], [], []>} : vector<2x128xbf16>, vector<128x1792xbf16>, vector<2x1792xf32> -> vector<2x1792xf32>
    %c0_99 = arith.constant 0 : index
    %c0_100 = arith.constant 0 : index
    %157 = vector.load %arg12[%c0_99, %c0_100] : memref<1x1792xf32, #tpu.memory_space<vmem>>, vector<1x1792xf32>
    %158 = vector.broadcast %157 : vector<1x1792xf32> to vector<2x1792xf32>
    %159 = arith.addf %156, %158 : vector<2x1792xf32>
    %c0_101 = arith.constant 0 : index
    %c0_102 = arith.constant 0 : index
    %160 = vector.load %arg14[%c0_101, %c0_102] : memref<2x1792xf32, #tpu.memory_space<vmem>>, vector<2x1792xf32>
    tpu.vector_store %arg14[%c0_101, %c0_102], %159 {strides = array<i32>} : memref<2x1792xf32, #tpu.memory_space<vmem>>, vector<2x1792xf32>,
    %161 = vector.extract_strided_slice %159 {offsets = [0, 0], sizes = [2, 128], strides = [1, 1]} : vector<2x1792xf32> to vector<2x128xf32>
    %162 = vector.extract_strided_slice %159 {offsets = [0, 128], sizes = [2, 128], strides = [1, 1]} : vector<2x1792xf32> to vector<2x128xf32>
    %163 = vector.extract_strided_slice %159 {offsets = [0, 256], sizes = [2, 128], strides = [1, 1]} : vector<2x1792xf32> to vector<2x128xf32>
    %164 = vector.extract_strided_slice %159 {offsets = [0, 384], sizes = [2, 128], strides = [1, 1]} : vector<2x1792xf32> to vector<2x128xf32>
    %165 = vector.extract_strided_slice %159 {offsets = [0, 512], sizes = [2, 128], strides = [1, 1]} : vector<2x1792xf32> to vector<2x128xf32>
    %166 = vector.extract_strided_slice %159 {offsets = [0, 640], sizes = [2, 128], strides = [1, 1]} : vector<2x1792xf32> to vector<2x128xf32>
    %167 = vector.extract_strided_slice %159 {offsets = [0, 768], sizes = [2, 128], strides = [1, 1]} : vector<2x1792xf32> to vector<2x128xf32>
    %168 = vector.extract_strided_slice %159 {offsets = [0, 896], sizes = [2, 128], strides = [1, 1]} : vector<2x1792xf32> to vector<2x128xf32>
    %169 = vector.extract_strided_slice %159 {offsets = [0, 1024], sizes = [2, 128], strides = [1, 1]} : vector<2x1792xf32> to vector<2x128xf32>
    %170 = vector.extract_strided_slice %159 {offsets = [0, 1152], sizes = [2, 128], strides = [1, 1]} : vector<2x1792xf32> to vector<2x128xf32>
    %171 = vector.extract_strided_slice %159 {offsets = [0, 1280], sizes = [2, 128], strides = [1, 1]} : vector<2x1792xf32> to vector<2x128xf32>
    %172 = vector.extract_strided_slice %159 {offsets = [0, 1408], sizes = [2, 128], strides = [1, 1]} : vector<2x1792xf32> to vector<2x128xf32>
    %173 = vector.extract_strided_slice %159 {offsets = [0, 1536], sizes = [2, 128], strides = [1, 1]} : vector<2x1792xf32> to vector<2x128xf32>
    %174 = vector.extract_strided_slice %159 {offsets = [0, 1664], sizes = [2, 128], strides = [1, 1]} : vector<2x1792xf32> to vector<2x128xf32>
    %175 = tpu.concatenate %161, %162, %163, %164, %165, %166, %167, %168, %169, %170, %171, %172, %173, %174 in 0 : vector<2x128xf32>, vector<2x128xf32>, vector<2x128xf32>, vector<2x128xf32>, vector<2x128xf32>, vector<2x128xf32>, vector<2x128xf32>, vector<2x128xf32>, vector<2x128xf32>, vector<2x128xf32>, vector<2x128xf32>, vector<2x128xf32>, vector<2x128xf32>, vector<2x128xf32> -> vector<28x128xf32>
    %176 = arith.truncf %175 : vector<28x128xf32> to vector<28x128xbf16>
    %c0_103 = arith.constant 0 : index
    %c0_104 = arith.constant 0 : index
    %177 = vector.load %arg17[%c0_103, %c0_104] : memref<128x512xbf16, #tpu.memory_space<vmem>>, vector<128x512xbf16>
    %cst_105 = arith.constant dense<0.000000e+00> : vector<28x512xf32>
    %178 = tpu.matmul %176, %177, %cst_105 {dimension_numbers = #tpu.dot_dimension_numbers<[1], [0], [0], [1], [0, 0, 1, 1], [], []>} : vector<28x128xbf16>, vector<128x512xbf16>, vector<28x512xf32> -> vector<28x512xf32>
    %c0_106 = arith.constant 0 : index
    %c0_107 = arith.constant 0 : index
    %179 = vector.load %arg15[%c0_106, %c0_107] : memref<28x512xf32, #tpu.memory_space<vmem>>, vector<28x512xf32>
    tpu.vector_store %arg15[%c0_106, %c0_107], %178 {strides = array<i32>} : memref<28x512xf32, #tpu.memory_space<vmem>>, vector<28x512xf32>,
    return
  }
}

</mosaic_0001>

<llo_original>
// kernel: video_codebook_forward.1
$region0: #{video_codebook_forward.1}
  #allocation0 [shape = 'u32[]', space=smem, size = 0x4, offset = 0x4, fixed_abs, tag = 'smem constant byte address 0x4 - core index']
  #allocation1 [shape = 'u32[72,128]{1,0:T(1,128)}', space=vmem, size = 0x9000, scoped, tag = 'internal scratch']
  #allocation2 [shape = 'bf16[128,1792]{1,0:T(8,128)(2,1)}', space=vmem, size = 0x70000, scoped, tag = 'scratch operand']
  #allocation3 [shape = 'bf16[128,512]{1,0:T(8,128)(2,1)}', space=vmem, size = 0x20000, scoped, tag = 'scratch operand']
  #allocation4 [shape = 's32[2]{0}', space=sflag, size = 0x8, scoped, tag = 'scratch operand']
  #allocation12 [shape = 's32[]', space=sflag, size = 0x4, offset = 0, fixed_abs, tag = 'sflag constant byte address 0x0 - dummy sync flag']
  #allocation13 [shape = 's32[]', space=sflag, size = 0x4, offset = 0, fixed_abs, tag = 'sflag constant byte address 0x0 - dummy sync flag']
  #allocation14 [shape = 'u32[]', space=smem, size = 0x4, offset = 0x44, fixed_abs, tag = 'smem constant byte address 0x44 - assertion arg 0']
  #allocation15 [shape = 'u32[]', space=smem, size = 0x4, offset = 0x48, fixed_abs, tag = 'smem constant byte address 0x48 - assertion arg 1']
  #allocation16 [shape = 's32[]', space=sflag, size = 0x4, offset = 0, fixed_abs, tag = 'sflag constant byte address 0x0 - dummy sync flag']
  %s0 = inlined_call_operand.vmem [shape: bf16[2,26,448], index: 0, kind: input, shape index: {}]
  %s1 = inlined_call_operand.vmem [shape: bf16[448,128], index: 1, kind: input, shape index: {}]
  %s2 = inlined_call_operand.vmem [shape: f32[1,128], index: 2, kind: input, shape index: {}]
  %s3 = inlined_call_operand.vmem [shape: bf16[3,128,128], index: 3, kind: input, shape index: {}]
  %s4 = inlined_call_operand.vmem [shape: f32[1,128], index: 4, kind: input, shape index: {}]
  %s5 = inlined_call_operand.vmem [shape: bf16[3,128,128], index: 5, kind: input, shape index: {}]
  %s6 = inlined_call_operand.vmem [shape: f32[1,128], index: 6, kind: input, shape index: {}]
  %s7 = inlined_call_operand.hbm [shape: bf16[128,128], index: 7, kind: input, shape index: {}]
  %s8 = inlined_call_operand.vmem [shape: f32[1,128], index: 8, kind: input, shape index: {}]
  %s9 = inlined_call_operand.hbm [shape: bf16[128,128], index: 9, kind: input, shape index: {}]
  %s10 = inlined_call_operand.vmem [shape: f32[1,128], index: 10, kind: input, shape index: {}]
  %s11 = inlined_call_operand.hbm [shape: bf16[128,1792], index: 11, kind: input, shape index: {}]
  %s12 = inlined_call_operand.hbm [shape: f32[1,1792], index: 12, kind: input, shape index: {}]
  %s13 = inlined_call_operand.vmem [shape: bf16[128,512], index: 13, kind: input, shape index: {}]
  %s14 = inlined_call_operand.hbm [shape: f32[2,1792], index: 14, kind: output, shape index: {0}]
  %s15 = inlined_call_operand.vmem [shape: f32[28,512], index: 15, kind: output, shape index: {1}]
  %16 = xla_tuple %s14, %s15
  %s17 = sld [smem:[#allocation0]]
  $region101: #{video_codebook_forward.1} parent=0
    _
  %s19 = ssub.s32 1, %s17
  %s20 = scalar_select 0, %s19, %s17
  $region1: #{video_codebook_forward.1} parent=0
    #allocation5 [shape = 'u8[32768]{0}', space=vmem, size = 0x8000, scoped, tag = 'input window, operand 7, single buffered']
    #allocation6 [shape = 's32[1]{0}', space=sflag, size = 0x4, scoped, tag = 'scoped memory for video_codebook_forward.1']
    #allocation7 [shape = 's32[1]{0}', space=sflag, size = 0x4, scoped, tag = 'scoped memory for video_codebook_forward.1']
    #allocation8 [shape = 'u8[32768]{0}', space=vmem, size = 0x8000, scoped, tag = 'input window, operand 9, single buffered']
    #allocation9 [shape = 's32[1]{0}', space=sflag, size = 0x4, scoped, tag = 'scoped memory for video_codebook_forward.1']
    #allocation10 [shape = 'u8[7168]{0}', space=vmem, size = 0x1c00, scoped, tag = 'input window, operand 12, single buffered']
    #allocation11 [shape = 'u8[14336]{0}', space=vmem, size = 0x3800, scoped, tag = 'output window, operand 0, single buffered']
    %21 = vsyncpa [#allocation6], 0
    %22 = vsyncpa [#allocation9], 0
    %23 = vsyncpa [#allocation7], 0
    // Predicated region
    $region2: #{video_codebook_forward.1} parent=1 // pred_check
      _
    $region3: #{video_codebook_forward.1} parent=1 // pred_check_branch
      %25 = sbr.rel (0) target = $region5
    $region4: #{video_codebook_forward.1} parent=1 // pred_region
      _
    $region5: #{video_codebook_forward.1} parent=1 // pred_fallthru
      _
    // Predicated region
    $region6: #{video_codebook_forward.1} parent=1 // pred_check
      _
    $region7: #{video_codebook_forward.1} parent=1 // pred_check_branch
      %27 = sbr.rel (0) target = $region9
    $region8: #{video_codebook_forward.1} parent=1 // pred_region
      _
    $region9: #{video_codebook_forward.1} parent=1 // pred_fallthru
      _
    // Predicated region
    $region10: #{video_codebook_forward.1} parent=1 // pred_check
      _
    $region11: #{video_codebook_forward.1} parent=1 // pred_check_branch
      %29 = sbr.rel (0) target = $region13
    $region12: #{video_codebook_forward.1} parent=1 // pred_region
      _
    $region13: #{video_codebook_forward.1} parent=1 // pred_fallthru
      _
    // Predicated region
    $region14: #{video_codebook_forward.1} parent=1 // pred_check
      _
    $region15: #{video_codebook_forward.1} parent=1 // pred_check_branch
      %31 = sbr.rel (0) target = $region17
    $region16: #{video_codebook_forward.1} parent=1 // pred_region
      _
    $region17: #{video_codebook_forward.1} parent=1 // pred_fallthru
      _
    // Predicated region
    $region18: #{video_codebook_forward.1} parent=1 // pred_check
      _
    $region19: #{video_codebook_forward.1} parent=1 // pred_check_branch
      %33 = sbr.rel (0) target = $region21
    $region20: #{video_codebook_forward.1} parent=1 // pred_region
      _
    $region21: #{video_codebook_forward.1} parent=1 // pred_fallthru
      _
    // Predicated region
    $region22: #{video_codebook_forward.1} parent=1 // pred_check
      _
    $region23: #{video_codebook_forward.1} parent=1 // pred_check_branch
      %35 = sbr.rel (0) target = $region25
    $region24: #{video_codebook_forward.1} parent=1 // pred_region
      _
    $region25: #{video_codebook_forward.1} parent=1 // pred_fallthru
      _
    // Predicated region
    $region26: #{video_codebook_forward.1} parent=1 // pred_check
      _
    $region27: #{video_codebook_forward.1} parent=1 // pred_check_branch
      %37 = sbr.rel (0) target = $region29
    $region28: #{video_codebook_forward.1} parent=1 // pred_region
      _
    $region29: #{video_codebook_forward.1} parent=1 // pred_fallthru
      _
    // Predicated region
    $region30: #{video_codebook_forward.1} parent=1 // pred_check
      _
    $region31: #{video_codebook_forward.1} parent=1 // pred_check_branch
      %39 = sbr.rel (0) target = $region33
    $region32: #{video_codebook_forward.1} parent=1 // pred_region
      %41 = vsyncadd [#allocation6], 0
      %s42 = sshll.u32 %s7, 4
      %s43 = int_to_ptr.hbm [resolvable:$true] %s42
      %s44 = sshll.u32 [#allocation5], 4
      %s45 = int_to_ptr.vmem [resolvable:$true] %s44
      %50 = dma.hbm_to_vmem [thread:$0]  %s43, 1024, %s45, [#allocation6], 64, 64, 4
    $region33: #{video_codebook_forward.1} parent=1 // pred_fallthru
      _
    // Predicated region
    $region34: #{video_codebook_forward.1} parent=1 // pred_check
      _
    $region35: #{video_codebook_forward.1} parent=1 // pred_check_branch
      %52 = sbr.rel (0) target = $region37
    $region36: #{video_codebook_forward.1} parent=1 // pred_region
      _
    $region37: #{video_codebook_forward.1} parent=1 // pred_fallthru
      _
    // Predicated region
    $region38: #{video_codebook_forward.1} parent=1 // pred_check
      _
    $region39: #{video_codebook_forward.1} parent=1 // pred_check_branch
      %54 = sbr.rel (0) target = $region41
    $region40: #{video_codebook_forward.1} parent=1 // pred_region
      %56 = vsyncadd [#allocation9], 0
      %s57 = sshll.u32 %s9, 4
      %s58 = int_to_ptr.hbm [resolvable:$true] %s57
      %s59 = sshll.u32 [#allocation8], 4
      %s60 = int_to_ptr.vmem [resolvable:$true] %s59
      %65 = dma.hbm_to_vmem [thread:$0]  %s58, 1024, %s60, [#allocation9], 64, 64, 4
    $region41: #{video_codebook_forward.1} parent=1 // pred_fallthru
      _
    // Predicated region
    $region42: #{video_codebook_forward.1} parent=1 // pred_check
      _
    $region43: #{video_codebook_forward.1} parent=1 // pred_check_branch
      %67 = sbr.rel (0) target = $region45
    $region44: #{video_codebook_forward.1} parent=1 // pred_region
      _
    $region45: #{video_codebook_forward.1} parent=1 // pred_fallthru
      _
    // Predicated region
    $region46: #{video_codebook_forward.1} parent=1 // pred_check
      _
    $region47: #{video_codebook_forward.1} parent=1 // pred_check_branch
      %69 = sbr.rel (0) target = $region49
    $region48: #{video_codebook_forward.1} parent=1 // pred_region
      %71 = vsyncadd [#allocation9], 0
      %s73 = sshll.u32 %s12, 4
      %s74 = int_to_ptr.hbm [resolvable:$true] %s73
      %s75 = sshll.u32 [#allocation10], 4
      %s76 = int_to_ptr.vmem [resolvable:$true] %s75
      %78 = dma.hbm_to_vmem [thread:$0]  %s74, 224, %s76, [#allocation9]
    $region49: #{video_codebook_forward.1} parent=1 // pred_fallthru
      _
    // Predicated region
    $region50: #{video_codebook_forward.1} parent=1 // pred_check
      _
    $region51: #{video_codebook_forward.1} parent=1 // pred_check_branch
      %80 = sbr.rel (0) target = $region53
    $region52: #{video_codebook_forward.1} parent=1 // pred_region
      %82 = dma.done [#allocation6], 1024
    $region53: #{video_codebook_forward.1} parent=1 // pred_fallthru
      _
    // Predicated region
    $region54: #{video_codebook_forward.1} parent=1 // pred_check
      _
    $region55: #{video_codebook_forward.1} parent=1 // pred_check_branch
      %84 = sbr.rel (0) target = $region57
    $region56: #{video_codebook_forward.1} parent=1 // pred_region
      %86 = dma.done [#allocation9], 1024
    $region57: #{video_codebook_forward.1} parent=1 // pred_fallthru
      _
    // Predicated region
    $region58: #{video_codebook_forward.1} parent=1 // pred_check
      _
    $region59: #{video_codebook_forward.1} parent=1 // pred_check_branch
      %88 = sbr.rel (0) target = $region61
    $region60: #{video_codebook_forward.1} parent=1 // pred_region
      %90 = dma.done [#allocation9], 224
    $region61: #{video_codebook_forward.1} parent=1 // pred_fallthru
      _
    // Predicated region
    $region62: #{video_codebook_forward.1} parent=1 // pred_check
      _
    $region63: #{video_codebook_forward.1} parent=1 // pred_check_branch
      %93 = sbr.rel target = $region65
    $region64: #{video_codebook_forward.1} parent=1 // pred_region
      %94 = sst [smem:[#allocation14]] [#allocation13]
      %95 = sst [smem:[#allocation15]] [#allocation12]
    $region65: #{video_codebook_forward.1} parent=1 // pred_fallthru
      _
    %97 = shalt.err (0)
    %s99 = sshll.u32 %s11, 4
    %s100 = int_to_ptr.hbm [resolvable:$true] %s99
    %s101 = sshll.u32 [#allocation2], 4
    %s102 = int_to_ptr.vmem [resolvable:$true] %s101
    %104 = dma.hbm_to_vmem [thread:$0]  %s100, 14336, %s102, [#allocation4]
    %s105 = scalar_lea.sflag [#allocation4], 1
    // Predicated region
    $region66: #{video_codebook_forward.1} parent=1 // pred_check
      _
    $region67: #{video_codebook_forward.1} parent=1 // pred_check_branch
      %107 = sbr.rel (0) target = $region69
    $region68: #{video_codebook_forward.1} parent=1 // pred_region
      loop: start=0, step=1, limit=1
      $region70: #{video_codebook_forward.1} parent=68 // loop_pre_header
        _
      $region71: #{video_codebook_forward.1} parent=68 // loop_header
        %s109 = sphi 0, %s113
        %p110 = scmp.ge.s32.totalorder %s109, 1
        %s114 = sphi %s13, %s13
        %s115 = sphi [#allocation3], [#allocation3]
      $region72: #{video_codebook_forward.1} parent=68 // loop_header_branch
        %112 = sbr.rel (%p110) target = $region76
      $region73: #{video_codebook_forward.1} parent=68 // loop_body
        %v116 = vld [vmem:[%s114] sm:$0xff]
        %117 = vst [vmem:[%s115] sm:$0xff] %v116
        %v118 = vld [vmem:[%s114 + $0x8] sm:$0xff]
        %119 = vst [vmem:[%s115 + $0x8] sm:$0xff] %v118
        %v120 = vld [vmem:[%s114 + $0x10] sm:$0xff]
        %121 = vst [vmem:[%s115 + $0x10] sm:$0xff] %v120
        %v122 = vld [vmem:[%s114 + $0x18] sm:$0xff]
        %123 = vst [vmem:[%s115 + $0x18] sm:$0xff] %v122
        %v124 = vld [vmem:[%s114 + $0x20] sm:$0xff]
        %125 = vst [vmem:[%s115 + $0x20] sm:$0xff] %v124
        %v126 = vld [vmem:[%s114 + $0x28] sm:$0xff]
        %127 = vst [vmem:[%s115 + $0x28] sm:$0xff] %v126
        %v128 = vld [vmem:[%s114 + $0x30] sm:$0xff]
        %129 = vst [vmem:[%s115 + $0x30] sm:$0xff] %v128
        %v130 = vld [vmem:[%s114 + $0x38] sm:$0xff]
        %131 = vst [vmem:[%s115 + $0x38] sm:$0xff] %v130
        %v132 = vld [vmem:[%s114 + $0x40] sm:$0xff]
        %133 = vst [vmem:[%s115 + $0x40] sm:$0xff] %v132
        %v134 = vld [vmem:[%s114 + $0x48] sm:$0xff]
        %135 = vst [vmem:[%s115 + $0x48] sm:$0xff] %v134
        %v136 = vld [vmem:[%s114 + $0x50] sm:$0xff]
        %137 = vst [vmem:[%s115 + $0x50] sm:$0xff] %v136
        %v138 = vld [vmem:[%s114 + $0x58] sm:$0xff]
        %139 = vst [vmem:[%s115 + $0x58] sm:$0xff] %v138
        %v140 = vld [vmem:[%s114 + $0x60] sm:$0xff]
        %141 = vst [vmem:[%s115 + $0x60] sm:$0xff] %v140
        %v142 = vld [vmem:[%s114 + $0x68] sm:$0xff]
        %143 = vst [vmem:[%s115 + $0x68] sm:$0xff] %v142
        %v144 = vld [vmem:[%s114 + $0x70] sm:$0xff]
        %145 = vst [vmem:[%s115 + $0x70] sm:$0xff] %v144
        %v146 = vld [vmem:[%s114 + $0x78] sm:$0xff]
        %147 = vst [vmem:[%s115 + $0x78] sm:$0xff] %v146
        %v148 = vld [vmem:[%s114 + $0x80] sm:$0xff]
        %149 = vst [vmem:[%s115 + $0x80] sm:$0xff] %v148
        %v150 = vld [vmem:[%s114 + $0x88] sm:$0xff]
        %151 = vst [vmem:[%s115 + $0x88] sm:$0xff] %v150
        %v152 = vld [vmem:[%s114 + $0x90] sm:$0xff]
        %153 = vst [vmem:[%s115 + $0x90] sm:$0xff] %v152
        %v154 = vld [vmem:[%s114 + $0x98] sm:$0xff]
        %155 = vst [vmem:[%s115 + $0x98] sm:$0xff] %v154
        %v156 = vld [vmem:[%s114 + $0xa0] sm:$0xff]
        %157 = vst [vmem:[%s115 + $0xa0] sm:$0xff] %v156
        %v158 = vld [vmem:[%s114 + $0xa8] sm:$0xff]
        %159 = vst [vmem:[%s115 + $0xa8] sm:$0xff] %v158
        %v160 = vld [vmem:[%s114 + $0xb0] sm:$0xff]
        %161 = vst [vmem:[%s115 + $0xb0] sm:$0xff] %v160
        %v162 = vld [vmem:[%s114 + $0xb8] sm:$0xff]
        %163 = vst [vmem:[%s115 + $0xb8] sm:$0xff] %v162
        %v164 = vld [vmem:[%s114 + $0xc0] sm:$0xff]
        %165 = vst [vmem:[%s115 + $0xc0] sm:$0xff] %v164
        %v166 = vld [vmem:[%s114 + $0xc8] sm:$0xff]
        %167 = vst [vmem:[%s115 + $0xc8] sm:$0xff] %v166
        %v168 = vld [vmem:[%s114 + $0xd0] sm:$0xff]
        %169 = vst [vmem:[%s115 + $0xd0] sm:$0xff] %v168
        %v170 = vld [vmem:[%s114 + $0xd8] sm:$0xff]
        %171 = vst [vmem:[%s115 + $0xd8] sm:$0xff] %v170
        %v172 = vld [vmem:[%s114 + $0xe0] sm:$0xff]
        %173 = vst [vmem:[%s115 + $0xe0] sm:$0xff] %v172
        %v174 = vld [vmem:[%s114 + $0xe8] sm:$0xff]
        %175 = vst [vmem:[%s115 + $0xe8] sm:$0xff] %v174
        %v176 = vld [vmem:[%s114 + $0xf0] sm:$0xff]
        %177 = vst [vmem:[%s115 + $0xf0] sm:$0xff] %v176
        %v178 = vld [vmem:[%s114 + $0xf8] sm:$0xff]
        %179 = vst [vmem:[%s115 + $0xf8] sm:$0xff] %v178
      $region74: #{video_codebook_forward.1} parent=68 // loop_footer
        %s113 = sadd.s32 1, %s109
      $region75: #{video_codebook_forward.1} parent=68 // loop_footer_branch
        %108 = sbr.rel target = $region71
      $region76: #{video_codebook_forward.1} parent=68 // loop_exit
        _
    $region69: #{video_codebook_forward.1} parent=1 // pred_fallthru
      _
    // Predicated region
    $region77: #{video_codebook_forward.1} parent=1 // pred_check
      _
    $region78: #{video_codebook_forward.1} parent=1 // pred_check_branch
      %181 = sbr.rel target = $region80
    $region79: #{video_codebook_forward.1} parent=1 // pred_region
      _
    $region80: #{video_codebook_forward.1} parent=1 // pred_fallthru
      _
    // Predicated region
    $region81: #{video_codebook_forward.1} parent=1 // pred_check
      _
    $region82: #{video_codebook_forward.1} parent=1 // pred_check_branch
      %184 = sbr.rel (0) target = $region84
    $region83: #{video_codebook_forward.1} parent=1 // pred_region
      %185 = vsyncadd %s105, 4096
    $region84: #{video_codebook_forward.1} parent=1 // pred_fallthru
      _
    %v186 = vld [vmem:[%s0] sm:$0xff]
    %v187 = vld [vmem:[%s0 + $0x8] sm:$0xff]
    %v188 = vld [vmem:[%s0 + $0x10] sm:$0xff]
    %v189 = vld [vmem:[%s0 + $0x18] sm:$0xff]
    %v190 = vld [vmem:[%s0 + $0x20] sm:$0xff]
    %v191 = vld [vmem:[%s0 + $0x28] sm:$0xff]
    %v192 = vld [vmem:[%s0 + $0x30] sm:$0x11]
    %v193 = vld [vmem:[%s0 + $0x38] sm:$0x11]
    %v194 = vld [vmem:[%s1] sm:$0xf]
    %v195 = vld [vmem:[%s1 + $0x4] sm:$0xf]
    %v196 = vld [vmem:[%s1 + $0x8] sm:$0xf]
    %v197 = vld [vmem:[%s1 + $0xc] sm:$0xf]
    %v198 = vld [vmem:[%s1 + $0x10] sm:$0xf]
    %v199 = vld [vmem:[%s1 + $0x14] sm:$0xf]
    %v200 = vld [vmem:[%s1 + $0x18] sm:$0xf]
    %v201 = vld [vmem:[%s1 + $0x1c] sm:$0xf]
    %v202 = vld [vmem:[%s1 + $0x20] sm:$0xf]
    %v203 = vld [vmem:[%s1 + $0x24] sm:$0xf]
    %v204 = vld [vmem:[%s1 + $0x28] sm:$0xf]
    %v205 = vld [vmem:[%s1 + $0x2c] sm:$0xf]
    %v206 = vld [vmem:[%s1 + $0x30] sm:$0xf]
    %v207 = vld [vmem:[%s1 + $0x34] sm:$0xf]
    %v208 = vld [vmem:[%s1 + $0x38] sm:$0xf]
    %v209 = vld [vmem:[%s1 + $0x3c] sm:$0xf]
    %v210 = vld [vmem:[%s1 + $0x40] sm:$0xf]
    %v211 = vld [vmem:[%s1 + $0x44] sm:$0xf]
    %v212 = vld [vmem:[%s1 + $0x48] sm:$0xf]
    %v213 = vld [vmem:[%s1 + $0x4c] sm:$0xf]
    %v214 = vld [vmem:[%s1 + $0x50] sm:$0xf]
    %v215 = vld [vmem:[%s1 + $0x54] sm:$0xf]
    %v216 = vld [vmem:[%s1 + $0x58] sm:$0xf]
    %v217 = vld [vmem:[%s1 + $0x5c] sm:$0xf]
    %v218 = vld [vmem:[%s1 + $0x60] sm:$0xf]
    %v219 = vld [vmem:[%s1 + $0x64] sm:$0xf]
    %v220 = vld [vmem:[%s1 + $0x68] sm:$0xf]
    %v221 = vld [vmem:[%s1 + $0x6c] sm:$0xf]
    %v222 = vld [vmem:[%s1 + $0x70] sm:$0xf]
    %v223 = vld [vmem:[%s1 + $0x74] sm:$0xf]
    %v224 = vld [vmem:[%s1 + $0x78] sm:$0xf]
    %v225 = vld [vmem:[%s1 + $0x7c] sm:$0xf]
    %v226 = vld [vmem:[%s1 + $0x80] sm:$0xf]
    %v227 = vld [vmem:[%s1 + $0x84] sm:$0xf]
    %v228 = vld [vmem:[%s1 + $0x88] sm:$0xf]
    %v229 = vld [vmem:[%s1 + $0x8c] sm:$0xf]
    %v230 = vld [vmem:[%s1 + $0x90] sm:$0xf]
    %v231 = vld [vmem:[%s1 + $0x94] sm:$0xf]
    %v232 = vld [vmem:[%s1 + $0x98] sm:$0xf]
    %v233 = vld [vmem:[%s1 + $0x9c] sm:$0xf]
    %v234 = vld [vmem:[%s1 + $0xa0] sm:$0xf]
    %v235 = vld [vmem:[%s1 + $0xa4] sm:$0xf]
    %v236 = vld [vmem:[%s1 + $0xa8] sm:$0xf]
    %v237 = vld [vmem:[%s1 + $0xac] sm:$0xf]
    %v238 = vld [vmem:[%s1 + $0xb0] sm:$0xf]
    %v239 = vld [vmem:[%s1 + $0xb4] sm:$0xf]
    %v240 = vld [vmem:[%s1 + $0xb8] sm:$0xf]
    %v241 = vld [vmem:[%s1 + $0xbc] sm:$0xf]
    %v242 = vld [vmem:[%s1 + $0xc0] sm:$0xf]
    %v243 = vld [vmem:[%s1 + $0xc4] sm:$0xf]
    %v244 = vld [vmem:[%s1 + $0xc8] sm:$0xf]
    %v245 = vld [vmem:[%s1 + $0xcc] sm:$0xf]
    %v246 = vld [vmem:[%s1 + $0xd0] sm:$0xf]
    %v247 = vld [vmem:[%s1 + $0xd4] sm:$0xf]
    %v248 = vld [vmem:[%s1 + $0xd8] sm:$0xf]
    %v249 = vld [vmem:[%s1 + $0xdc] sm:$0xf]
    %v250 = vld [vmem:[%s2] sm:$0x1]
    %v252 = vperm.slane %v250, 0
    %v262 = vunpack.c.l.b16 %v186
    %v263 = vunpack.c.h.b16 %v186
    %v264 = vunpack.c.l.b16 %v187
    %v265 = vunpack.c.h.b16 %v187
    %v266 = vunpack.c.l.b16 %v188
    %v267 = vunpack.c.h.b16 %v188
    %v268 = vunpack.c.l.b16 %v189
    %v269 = vunpack.c.h.b16 %v189
    %v270 = vunpack.c.l.b16 %v190
    %v271 = vunpack.c.h.b16 %v190
    %v272 = vunpack.c.l.b16 %v191
    %v273 = vunpack.c.h.b16 %v191
    %v274 = vunpack.c.l.b16 %v192
    %v275 = vunpack.c.h.b16 %v192
    %v276 = vunpack.c.l.b16 %v193
    %v277 = vunpack.c.h.b16 %v193
    %v278 = vpack.c.b16 %v266, %v262
    %v279 = vpack.c.b16 %v267, %v263
    %v280 = vpack.c.b16 %v268, %v264
    %v281 = vpack.c.b16 %v269, %v265
    %v282 = vpack.c.b16 %v274, %v270
    %v283 = vpack.c.b16 %v275, %v271
    %v284 = vpack.c.b16 %v276, %v272
    %v285 = vpack.c.b16 %v277, %v273
    %v348 = vunpack.c.l.b16 %v194
    %v349 = vunpack.c.l.b16 %v195
    %v350 = vunpack.c.l.b16 %v196
    %v351 = vunpack.c.l.b16 %v197
    %v352 = vunpack.c.l.b16 %v198
    %v353 = vunpack.c.l.b16 %v199
    %v354 = vunpack.c.l.b16 %v200
    %v355 = vunpack.c.l.b16 %v201
    %v356 = vunpack.c.l.b16 %v202
    %v357 = vunpack.c.l.b16 %v203
    %v358 = vunpack.c.l.b16 %v204
    %v359 = vunpack.c.l.b16 %v205
    %v360 = vunpack.c.l.b16 %v206
    %v361 = vunpack.c.l.b16 %v207
    %v362 = vunpack.c.l.b16 %v208
    %v363 = vunpack.c.l.b16 %v209
    %v364 = vunpack.c.l.b16 %v210
    %v365 = vunpack.c.l.b16 %v211
    %v366 = vunpack.c.l.b16 %v212
    %v367 = vunpack.c.l.b16 %v213
    %v368 = vunpack.c.l.b16 %v214
    %v369 = vunpack.c.l.b16 %v215
    %v370 = vunpack.c.l.b16 %v216
    %v371 = vunpack.c.l.b16 %v217
    %v372 = vunpack.c.l.b16 %v218
    %v373 = vunpack.c.l.b16 %v219
    %v374 = vunpack.c.l.b16 %v220
    %v375 = vunpack.c.l.b16 %v221
    %v376 = vunpack.c.l.b16 %v222
    %v377 = vunpack.c.l.b16 %v223
    %v378 = vunpack.c.l.b16 %v224
    %v379 = vunpack.c.l.b16 %v225
    %v380 = vunpack.c.l.b16 %v226
    %v381 = vunpack.c.l.b16 %v227
    %v382 = vunpack.c.l.b16 %v228
    %v383 = vunpack.c.l.b16 %v229
    %v384 = vunpack.c.l.b16 %v230
    %v385 = vunpack.c.l.b16 %v231
    %v386 = vunpack.c.l.b16 %v232
    %v387 = vunpack.c.l.b16 %v233
    %v388 = vunpack.c.l.b16 %v234
    %v389 = vunpack.c.l.b16 %v235
    %v390 = vunpack.c.l.b16 %v236
    %v391 = vunpack.c.l.b16 %v237
    %v392 = vunpack.c.l.b16 %v238
    %v393 = vunpack.c.l.b16 %v239
    %v394 = vunpack.c.l.b16 %v240
    %v395 = vunpack.c.l.b16 %v241
    %v396 = vunpack.c.l.b16 %v242
    %v397 = vunpack.c.l.b16 %v243
    %v398 = vunpack.c.l.b16 %v244
    %v399 = vunpack.c.l.b16 %v245
    %v400 = vunpack.c.l.b16 %v246
    %v401 = vunpack.c.l.b16 %v247
    %v402 = vunpack.c.l.b16 %v248
    %v403 = vunpack.c.l.b16 %v249
    %v404 = vpack.c.b16 %v349, %v348
    %v405 = vpack.c.b16 %v351, %v350
    %v406 = vpack.c.b16 %v353, %v352
    %v407 = vpack.c.b16 %v355, %v354
    %v408 = vpack.c.b16 %v357, %v356
    %v409 = vpack.c.b16 %v359, %v358
    %v410 = vpack.c.b16 %v361, %v360
    %v411 = vpack.c.b16 %v363, %v362
    %v412 = vpack.c.b16 %v365, %v364
    %v413 = vpack.c.b16 %v367, %v366
    %v414 = vpack.c.b16 %v369, %v368
    %v415 = vpack.c.b16 %v371, %v370
    %v416 = vpack.c.b16 %v373, %v372
    %v417 = vpack.c.b16 %v375, %v374
    %v418 = vpack.c.b16 %v377, %v376
    %v419 = vpack.c.b16 %v379, %v378
    %v420 = vpack.c.b16 %v381, %v380
    %v421 = vpack.c.b16 %v383, %v382
    %v422 = vpack.c.b16 %v385, %v384
    %v423 = vpack.c.b16 %v387, %v386
    %v424 = vpack.c.b16 %v389, %v388
    %v425 = vpack.c.b16 %v391, %v390
    %v426 = vpack.c.b16 %v393, %v392
    %v427 = vpack.c.b16 %v395, %v394
    %v428 = vpack.c.b16 %v397, %v396
    %v429 = vpack.c.b16 %v399, %v398
    %v430 = vpack.c.b16 %v401, %v400
    %v431 = vpack.c.b16 %v403, %v402
    %vm460 = vcmask 523264
    %v462 = vsel %vm460, %v281, 0
    %v465 = vsel %vm460, %v285, 0
    %467 = vmatpush.bf16.msra.mxu0 %v411
    %468 = vmatpush.bf16.msra.mxu0 %v410
    %469 = vmatpush.bf16.msra.mxu0 %v409
    %470 = vmatpush.bf16.msra.mxu0 %v408
    %471 = vmatpush.bf16.msra.mxu0 %v407
    %472 = vmatpush.bf16.msra.mxu0 %v406
    %473 = vmatpush.bf16.msra.mxu0 %v405
    %474 = vmatpush.bf16.msra.mxu0 %v404
    %475 = vmatmul.bf16.gmra.mxu0 %v278
    %v476 = vpop.f32.mrf.mxu0
    %v477 = vadd.f32 %v252, %v476
    %v478 = vpop.f32.mrf.mxu0
    %v479 = vadd.f32 %v252, %v478
    %480 = vmatmul.bf16.gmra.mxu0 %v282
    %v481 = vpop.f32.mrf.mxu0
    %v482 = vadd.f32 %v252, %v481
    %v483 = vpop.f32.mrf.mxu0
    %v484 = vadd.f32 %v252, %v483
    %485 = vdwg.mxu0
    %486 = vmatpush.bf16.msra.mxu0 %v419
    %487 = vmatpush.bf16.msra.mxu0 %v418
    %488 = vmatpush.bf16.msra.mxu0 %v417
    %489 = vmatpush.bf16.msra.mxu0 %v416
    %490 = vmatpush.bf16.msra.mxu0 %v415
    %491 = vmatpush.bf16.msra.mxu0 %v414
    %492 = vmatpush.bf16.msra.mxu0 %v413
    %493 = vmatpush.bf16.msra.mxu0 %v412
    %494 = vmatmul.bf16.gmra.mxu0 %v279
    %v495 = vpop.f32.mrf.mxu0
    %v496 = vadd.f32 %v477, %v495
    %v497 = vpop.f32.mrf.mxu0
    %v498 = vadd.f32 %v479, %v497
    %499 = vmatmul.bf16.gmra.mxu0 %v283
    %v500 = vpop.f32.mrf.mxu0
    %v501 = vadd.f32 %v482, %v500
    %v502 = vpop.f32.mrf.mxu0
    %v503 = vadd.f32 %v484, %v502
    %504 = vdwg.mxu0
    %505 = vmatpush.bf16.msra.mxu0 %v427
    %506 = vmatpush.bf16.msra.mxu0 %v426
    %507 = vmatpush.bf16.msra.mxu0 %v425
    %508 = vmatpush.bf16.msra.mxu0 %v424
    %509 = vmatpush.bf16.msra.mxu0 %v423
    %510 = vmatpush.bf16.msra.mxu0 %v422
    %511 = vmatpush.bf16.msra.mxu0 %v421
    %512 = vmatpush.bf16.msra.mxu0 %v420
    %513 = vmatmul.bf16.gmra.mxu0 %v280
    %v514 = vpop.f32.mrf.mxu0
    %v515 = vadd.f32 %v496, %v514
    %v516 = vpop.f32.mrf.mxu0
    %v517 = vadd.f32 %v498, %v516
    %518 = vmatmul.bf16.gmra.mxu0 %v284
    %v519 = vpop.f32.mrf.mxu0
    %v520 = vadd.f32 %v501, %v519
    %v521 = vpop.f32.mrf.mxu0
    %v522 = vadd.f32 %v503, %v521
    %523 = vdwg.mxu0
    %524 = vmatpush.bf16.msra.mxu0 0
    %525 = vmatpush.bf16.msra.mxu0 0
    %526 = vmatpush.bf16.msra.mxu0 0
    %527 = vmatpush.bf16.msra.mxu0 0
    %528 = vmatpush.bf16.msra.mxu0 %v431
    %529 = vmatpush.bf16.msra.mxu0 %v430
    %530 = vmatpush.bf16.msra.mxu0 %v429
    %531 = vmatpush.bf16.msra.mxu0 %v428
    %532 = vmatmul.bf16.gmra.mxu0 %v462
    %v533 = vpop.f32.mrf.mxu0
    %v534 = vadd.f32 %v515, %v533
    %v535 = vpop.f32.mrf.mxu0
    %v536 = vadd.f32 %v517, %v535
    %537 = vmatmul.bf16.gmra.mxu0 %v465
    %v538 = vpop.f32.mrf.mxu0
    %v539 = vadd.f32 %v520, %v538
    %v540 = vpop.f32.mrf.mxu0
    %v541 = vadd.f32 %v522, %v540
    %542 = vdwg.mxu0
    %s543 = scalar_lea.vmem %s0, 64
    %v544 = vld [vmem:[%s543] sm:$0xff]
    %v545 = vld [vmem:[%s543 + $0x8] sm:$0xff]
    %v546 = vld [vmem:[%s543 + $0x10] sm:$0xff]
    %v547 = vld [vmem:[%s543 + $0x18] sm:$0xff]
    %v548 = vld [vmem:[%s543 + $0x20] sm:$0xff]
    %v549 = vld [vmem:[%s543 + $0x28] sm:$0xff]
    %v550 = vld [vmem:[%s543 + $0x30] sm:$0x11]
    %v551 = vld [vmem:[%s543 + $0x38] sm:$0x11]
    %v560 = vunpack.c.l.b16 %v544
    %v561 = vunpack.c.h.b16 %v544
    %v562 = vunpack.c.l.b16 %v545
    %v563 = vunpack.c.h.b16 %v545
    %v564 = vunpack.c.l.b16 %v546
    %v565 = vunpack.c.h.b16 %v546
    %v566 = vunpack.c.l.b16 %v547
    %v567 = vunpack.c.h.b16 %v547
    %v568 = vunpack.c.l.b16 %v548
    %v569 = vunpack.c.h.b16 %v548
    %v570 = vunpack.c.l.b16 %v549
    %v571 = vunpack.c.h.b16 %v549
    %v572 = vunpack.c.l.b16 %v550
    %v573 = vunpack.c.h.b16 %v550
    %v574 = vunpack.c.l.b16 %v551
    %v575 = vunpack.c.h.b16 %v551
    %v576 = vpack.c.b16 %v564, %v560
    %v577 = vpack.c.b16 %v565, %v561
    %v578 = vpack.c.b16 %v566, %v562
    %v579 = vpack.c.b16 %v567, %v563
    %v580 = vpack.c.b16 %v572, %v568
    %v581 = vpack.c.b16 %v573, %v569
    %v582 = vpack.c.b16 %v574, %v570
    %v583 = vpack.c.b16 %v575, %v571
    %v591 = vsel %vm460, %v579, 0
    %v594 = vsel %vm460, %v583, 0
    %596 = vmatpush.bf16.msra.mxu0 %v411
    %597 = vmatpush.bf16.msra.mxu0 %v410
    %598 = vmatpush.bf16.msra.mxu0 %v409
    %599 = vmatpush.bf16.msra.mxu0 %v408
    %600 = vmatpush.bf16.msra.mxu0 %v407
    %601 = vmatpush.bf16.msra.mxu0 %v406
    %602 = vmatpush.bf16.msra.mxu0 %v405
    %603 = vmatpush.bf16.msra.mxu0 %v404
    %604 = vmatmul.bf16.gmra.mxu0 %v576
    %v605 = vpop.f32.mrf.mxu0
    %v606 = vadd.f32 %v252, %v605
    %v607 = vpop.f32.mrf.mxu0
    %v608 = vadd.f32 %v252, %v607
    %609 = vmatmul.bf16.gmra.mxu0 %v580
    %v610 = vpop.f32.mrf.mxu0
    %v611 = vadd.f32 %v252, %v610
    %v612 = vpop.f32.mrf.mxu0
    %v613 = vadd.f32 %v252, %v612
    %614 = vdwg.mxu0
    %615 = vmatpush.bf16.msra.mxu0 %v419
    %616 = vmatpush.bf16.msra.mxu0 %v418
    %617 = vmatpush.bf16.msra.mxu0 %v417
    %618 = vmatpush.bf16.msra.mxu0 %v416
    %619 = vmatpush.bf16.msra.mxu0 %v415
    %620 = vmatpush.bf16.msra.mxu0 %v414
    %621 = vmatpush.bf16.msra.mxu0 %v413
    %622 = vmatpush.bf16.msra.mxu0 %v412
    %623 = vmatmul.bf16.gmra.mxu0 %v577
    %v624 = vpop.f32.mrf.mxu0
    %v625 = vadd.f32 %v606, %v624
    %v626 = vpop.f32.mrf.mxu0
    %v627 = vadd.f32 %v608, %v626
    %628 = vmatmul.bf16.gmra.mxu0 %v581
    %v629 = vpop.f32.mrf.mxu0
    %v630 = vadd.f32 %v611, %v629
    %v631 = vpop.f32.mrf.mxu0
    %v632 = vadd.f32 %v613, %v631
    %633 = vdwg.mxu0
    %634 = vmatpush.bf16.msra.mxu0 %v427
    %635 = vmatpush.bf16.msra.mxu0 %v426
    %636 = vmatpush.bf16.msra.mxu0 %v425
    %637 = vmatpush.bf16.msra.mxu0 %v424
    %638 = vmatpush.bf16.msra.mxu0 %v423
    %639 = vmatpush.bf16.msra.mxu0 %v422
    %640 = vmatpush.bf16.msra.mxu0 %v421
    %641 = vmatpush.bf16.msra.mxu0 %v420
    %642 = vmatmul.bf16.gmra.mxu0 %v578
    %v643 = vpop.f32.mrf.mxu0
    %v644 = vadd.f32 %v625, %v643
    %v645 = vpop.f32.mrf.mxu0
    %v646 = vadd.f32 %v627, %v645
    %647 = vmatmul.bf16.gmra.mxu0 %v582
    %v648 = vpop.f32.mrf.mxu0
    %v649 = vadd.f32 %v630, %v648
    %v650 = vpop.f32.mrf.mxu0
    %v651 = vadd.f32 %v632, %v650
    %652 = vdwg.mxu0
    %653 = vmatpush.bf16.msra.mxu0 0
    %654 = vmatpush.bf16.msra.mxu0 0
    %655 = vmatpush.bf16.msra.mxu0 0
    %656 = vmatpush.bf16.msra.mxu0 0
    %657 = vmatpush.bf16.msra.mxu0 %v431
    %658 = vmatpush.bf16.msra.mxu0 %v430
    %659 = vmatpush.bf16.msra.mxu0 %v429
    %660 = vmatpush.bf16.msra.mxu0 %v428
    %661 = vmatmul.bf16.gmra.mxu0 %v591
    %v662 = vpop.f32.mrf.mxu0
    %v663 = vadd.f32 %v644, %v662
    %v664 = vpop.f32.mrf.mxu0
    %v665 = vadd.f32 %v646, %v664
    %666 = vmatmul.bf16.gmra.mxu0 %v594
    %v667 = vpop.f32.mrf.mxu0
    %v668 = vadd.f32 %v649, %v667
    %v669 = vpop.f32.mrf.mxu0
    %v670 = vadd.f32 %v651, %v669
    %671 = vdwg.mxu0
    %vm672 = vcmp.gt.f32.partialorder %v534, 0.0
    %vm673 = vcmp.gt.f32.partialorder %v536, 0.0
    %vm674 = vcmp.gt.f32.partialorder %v539, 0.0
    %vm675 = vcmp.gt.f32.partialorder %v541, 0.0
    %v676 = vmul.f32 %v534, 0.1
    %v677 = vmul.f32 %v536, 0.1
    %v678 = vmul.f32 %v539, 0.1
    %v679 = vmul.f32 %v541, 0.1
    %v680 = vsel %vm672, %v534, %v676
    %v681 = vsel %vm673, %v536, %v677
    %v682 = vsel %vm674, %v539, %v678
    %v683 = vsel %vm675, %v541, %v679
    %v684 = vpack.c.bf16 %v680, %v680
    %v685 = vpack.c.bf16 %v681, %v681
    %v686 = vpack.c.bf16 %v682, %v682
    %v687 = vpack.c.bf16 %v683, %v683
    %v688 = vld [vmem:[%s4] sm:$0x1]
    %v689 = vld [vmem:[%s3] sm:$0xf]
    %v690 = vld [vmem:[%s3 + $0x4] sm:$0xf]
    %v691 = vld [vmem:[%s3 + $0x8] sm:$0xf]
    %v692 = vld [vmem:[%s3 + $0xc] sm:$0xf]
    %v693 = vld [vmem:[%s3 + $0x10] sm:$0xf]
    %v694 = vld [vmem:[%s3 + $0x14] sm:$0xf]
    %v695 = vld [vmem:[%s3 + $0x18] sm:$0xf]
    %v696 = vld [vmem:[%s3 + $0x1c] sm:$0xf]
    %v697 = vld [vmem:[%s3 + $0x20] sm:$0xf]
    %v698 = vld [vmem:[%s3 + $0x24] sm:$0xf]
    %v699 = vld [vmem:[%s3 + $0x28] sm:$0xf]
    %v700 = vld [vmem:[%s3 + $0x2c] sm:$0xf]
    %v701 = vld [vmem:[%s3 + $0x30] sm:$0xf]
    %v702 = vld [vmem:[%s3 + $0x34] sm:$0xf]
    %v703 = vld [vmem:[%s3 + $0x38] sm:$0xf]
    %v704 = vld [vmem:[%s3 + $0x3c] sm:$0xf]
    %v708 = vunpack.c.l.b16 %v684
    %v709 = vunpack.c.l.b16 %v685
    %v710 = vunpack.c.l.b16 %v686
    %v711 = vpack.c.b16 %v709, %v708
    %v712 = vpack.c.b16 %v710, %v710
    %v731 = vunpack.c.l.b16 %v689
    %v732 = vunpack.c.l.b16 %v690
    %v733 = vunpack.c.l.b16 %v691
    %v734 = vunpack.c.l.b16 %v692
    %v735 = vunpack.c.l.b16 %v693
    %v736 = vunpack.c.l.b16 %v694
    %v737 = vunpack.c.l.b16 %v695
    %v738 = vunpack.c.l.b16 %v696
    %v739 = vunpack.c.l.b16 %v697
    %v740 = vunpack.c.l.b16 %v698
    %v741 = vunpack.c.l.b16 %v699
    %v742 = vunpack.c.l.b16 %v700
    %v743 = vunpack.c.l.b16 %v701
    %v744 = vunpack.c.l.b16 %v702
    %v745 = vunpack.c.l.b16 %v703
    %v746 = vunpack.c.l.b16 %v704
    %v747 = vpack.c.b16 %v732, %v731
    %v748 = vpack.c.b16 %v734, %v733
    %v749 = vpack.c.b16 %v736, %v735
    %v750 = vpack.c.b16 %v738, %v737
    %v751 = vpack.c.b16 %v740, %v739
    %v752 = vpack.c.b16 %v742, %v741
    %v753 = vpack.c.b16 %v744, %v743
    %v754 = vpack.c.b16 %v746, %v745
    %763 = vmatpush.bf16.msra.mxu0 %v754
    %764 = vmatpush.bf16.msra.mxu0 %v753
    %765 = vmatpush.bf16.msra.mxu0 %v752
    %766 = vmatpush.bf16.msra.mxu0 %v751
    %767 = vmatpush.bf16.msra.mxu0 %v750
    %768 = vmatpush.bf16.msra.mxu0 %v749
    %769 = vmatpush.bf16.msra.mxu0 %v748
    %770 = vmatpush.bf16.msra.mxu0 %v747
    %771 = vmatmul.bf16.gmra.mxu0 %v711
    %v772 = vpop.f32.mrf.mxu0
    %v773 = vadd.f32 0.0, %v772
    %v774 = vpop.f32.mrf.mxu0
    %v775 = vadd.f32 0.0, %v774
    %776 = vmatmul.bf16.gmra.mxu0 %v712
    %v777 = vpop.f32.mrf.mxu0
    %v778 = vadd.f32 0.0, %v777
    %v779 = vpop.f32.mrf.mxu0
    %780 = vdwg.mxu0
    %v782 = vperm.slane %v688, 0
    %v784 = vadd.f32 %v782, %v773
    %v785 = vadd.f32 %v782, %v775
    %v786 = vadd.f32 %v782, %v778
    %s787 = scalar_lea.vmem %s3, 64
    %v788 = vld [vmem:[%s787] sm:$0xf]
    %v789 = vld [vmem:[%s787 + $0x4] sm:$0xf]
    %v790 = vld [vmem:[%s787 + $0x8] sm:$0xf]
    %v791 = vld [vmem:[%s787 + $0xc] sm:$0xf]
    %v792 = vld [vmem:[%s787 + $0x10] sm:$0xf]
    %v793 = vld [vmem:[%s787 + $0x14] sm:$0xf]
    %v794 = vld [vmem:[%s787 + $0x18] sm:$0xf]
    %v795 = vld [vmem:[%s787 + $0x1c] sm:$0xf]
    %v796 = vld [vmem:[%s787 + $0x20] sm:$0xf]
    %v797 = vld [vmem:[%s787 + $0x24] sm:$0xf]
    %v798 = vld [vmem:[%s787 + $0x28] sm:$0xf]
    %v799 = vld [vmem:[%s787 + $0x2c] sm:$0xf]
    %v800 = vld [vmem:[%s787 + $0x30] sm:$0xf]
    %v801 = vld [vmem:[%s787 + $0x34] sm:$0xf]
    %v802 = vld [vmem:[%s787 + $0x38] sm:$0xf]
    %v803 = vld [vmem:[%s787 + $0x3c] sm:$0xf]
    %vm804 = vsmask.f32 6400
    %v806 = vshrl.u32 %v711, 16
    %v808 = vrot.slane %v806, 1
    %v809 = vshll.u32 %v711, 16
    %v811 = vrot.slane %v809, 2
    %v812 = vor.u32 %v808, %v811
    %v814 = vshrl.u32 %v712, 16
    %v816 = vrot.slane %v814, 1
    %v817 = vshll.u32 %v712, 16
    %v819 = vrot.slane %v817, 2
    %v820 = vor.u32 %v816, %v819
    %v821 = vsel %vm804, %v812, %v820
    %v840 = vunpack.c.l.b16 %v788
    %v841 = vunpack.c.l.b16 %v789
    %v842 = vunpack.c.l.b16 %v790
    %v843 = vunpack.c.l.b16 %v791
    %v844 = vunpack.c.l.b16 %v792
    %v845 = vunpack.c.l.b16 %v793
    %v846 = vunpack.c.l.b16 %v794
    %v847 = vunpack.c.l.b16 %v795
    %v848 = vunpack.c.l.b16 %v796
    %v849 = vunpack.c.l.b16 %v797
    %v850 = vunpack.c.l.b16 %v798
    %v851 = vunpack.c.l.b16 %v799
    %v852 = vunpack.c.l.b16 %v800
    %v853 = vunpack.c.l.b16 %v801
    %v854 = vunpack.c.l.b16 %v802
    %v855 = vunpack.c.l.b16 %v803
    %v856 = vpack.c.b16 %v841, %v840
    %v857 = vpack.c.b16 %v843, %v842
    %v858 = vpack.c.b16 %v845, %v844
    %v859 = vpack.c.b16 %v847, %v846
    %v860 = vpack.c.b16 %v849, %v848
    %v861 = vpack.c.b16 %v851, %v850
    %v862 = vpack.c.b16 %v853, %v852
    %v863 = vpack.c.b16 %v855, %v854
    %872 = vmatpush.bf16.msra.mxu0 %v863
    %873 = vmatpush.bf16.msra.mxu0 %v862
    %874 = vmatpush.bf16.msra.mxu0 %v861
    %875 = vmatpush.bf16.msra.mxu0 %v860
    %876 = vmatpush.bf16.msra.mxu0 %v859
    %877 = vmatpush.bf16.msra.mxu0 %v858
    %878 = vmatpush.bf16.msra.mxu0 %v857
    %879 = vmatpush.bf16.msra.mxu0 %v856
    %880 = vmatmul.bf16.gmra.mxu0 %v821
    %v881 = vpop.f32.mrf.mxu0
    %v882 = vadd.f32 0.0, %v881
    %v883 = vpop.f32.mrf.mxu0
    %v884 = vadd.f32 0.0, %v883
    %885 = vmatmul.bf16.gmra.mxu0 %v820
    %v886 = vpop.f32.mrf.mxu0
    %v887 = vadd.f32 0.0, %v886
    %v888 = vpop.f32.mrf.mxu0
    %889 = vdwg.mxu0
    %v890 = vadd.f32 %v784, %v882
    %v891 = vadd.f32 %v785, %v884
    %v892 = vadd.f32 %v786, %v887
    %s893 = scalar_lea.vmem %s3, 128
    %v894 = vld [vmem:[%s893] sm:$0xf]
    %v895 = vld [vmem:[%s893 + $0x4] sm:$0xf]
    %v896 = vld [vmem:[%s893 + $0x8] sm:$0xf]
    %v897 = vld [vmem:[%s893 + $0xc] sm:$0xf]
    %v898 = vld [vmem:[%s893 + $0x10] sm:$0xf]
    %v899 = vld [vmem:[%s893 + $0x14] sm:$0xf]
    %v900 = vld [vmem:[%s893 + $0x18] sm:$0xf]
    %v901 = vld [vmem:[%s893 + $0x1c] sm:$0xf]
    %v902 = vld [vmem:[%s893 + $0x20] sm:$0xf]
    %v903 = vld [vmem:[%s893 + $0x24] sm:$0xf]
    %v904 = vld [vmem:[%s893 + $0x28] sm:$0xf]
    %v905 = vld [vmem:[%s893 + $0x2c] sm:$0xf]
    %v906 = vld [vmem:[%s893 + $0x30] sm:$0xf]
    %v907 = vld [vmem:[%s893 + $0x34] sm:$0xf]
    %v908 = vld [vmem:[%s893 + $0x38] sm:$0xf]
    %v909 = vld [vmem:[%s893 + $0x3c] sm:$0xf]
    %v911 = vunpack.c.l.b16 %v687
    %v912 = vpack.c.b16 %v911, %v710
    %vm913 = vcmask 1044480
    %v914 = vrot.slane %v711, 3
    %v915 = vrot.slane %v912, 3
    %v916 = vsel %vm913, %v914, %v915
    %v935 = vunpack.c.l.b16 %v894
    %v936 = vunpack.c.l.b16 %v895
    %v937 = vunpack.c.l.b16 %v896
    %v938 = vunpack.c.l.b16 %v897
    %v939 = vunpack.c.l.b16 %v898
    %v940 = vunpack.c.l.b16 %v899
    %v941 = vunpack.c.l.b16 %v900
    %v942 = vunpack.c.l.b16 %v901
    %v943 = vunpack.c.l.b16 %v902
    %v944 = vunpack.c.l.b16 %v903
    %v945 = vunpack.c.l.b16 %v904
    %v946 = vunpack.c.l.b16 %v905
    %v947 = vunpack.c.l.b16 %v906
    %v948 = vunpack.c.l.b16 %v907
    %v949 = vunpack.c.l.b16 %v908
    %v950 = vunpack.c.l.b16 %v909
    %v951 = vpack.c.b16 %v936, %v935
    %v952 = vpack.c.b16 %v938, %v937
    %v953 = vpack.c.b16 %v940, %v939
    %v954 = vpack.c.b16 %v942, %v941
    %v955 = vpack.c.b16 %v944, %v943
    %v956 = vpack.c.b16 %v946, %v945
    %v957 = vpack.c.b16 %v948, %v947
    %v958 = vpack.c.b16 %v950, %v949
    %967 = vmatpush.bf16.msra.mxu0 %v958
    %968 = vmatpush.bf16.msra.mxu0 %v957
    %969 = vmatpush.bf16.msra.mxu0 %v956
    %970 = vmatpush.bf16.msra.mxu0 %v955
    %971 = vmatpush.bf16.msra.mxu0 %v954
    %972 = vmatpush.bf16.msra.mxu0 %v953
    %973 = vmatpush.bf16.msra.mxu0 %v952
    %974 = vmatpush.bf16.msra.mxu0 %v951
    %975 = vmatmul.bf16.gmra.mxu0 %v916
    %v976 = vpop.f32.mrf.mxu0
    %v977 = vadd.f32 0.0, %v976
    %v978 = vpop.f32.mrf.mxu0
    %v979 = vadd.f32 0.0, %v978
    %980 = vmatmul.bf16.gmra.mxu0 %v915
    %v981 = vpop.f32.mrf.mxu0
    %v982 = vadd.f32 0.0, %v981
    %v983 = vpop.f32.mrf.mxu0
    %984 = vdwg.mxu0
    %v985 = vadd.f32 %v890, %v977
    %v986 = vadd.f32 %v891, %v979
    %v987 = vadd.f32 %v892, %v982
    %vm991 = vcmask 1044480
    %v992 = vrot.slane %v534, 3
    %v993 = vrot.slane %v536, 3
    %v994 = vsel %vm991, %v992, %v993
    %v995 = vrot.slane %v539, 3
    %v996 = vsel %vm991, %v993, %v995
    %v1000 = vadd.f32 %v985, %v994
    %v1001 = vadd.f32 %v986, %v996
    %v1002 = vadd.f32 %v987, %v995
    %vm1003 = vcmp.gt.f32.partialorder %v663, 0.0
    %vm1004 = vcmp.gt.f32.partialorder %v665, 0.0
    %vm1005 = vcmp.gt.f32.partialorder %v668, 0.0
    %vm1006 = vcmp.gt.f32.partialorder %v670, 0.0
    %v1007 = vmul.f32 %v663, 0.1
    %v1008 = vmul.f32 %v665, 0.1
    %v1009 = vmul.f32 %v668, 0.1
    %v1010 = vmul.f32 %v670, 0.1
    %v1011 = vsel %vm1003, %v663, %v1007
    %v1012 = vsel %vm1004, %v665, %v1008
    %v1013 = vsel %vm1005, %v668, %v1009
    %v1014 = vsel %vm1006, %v670, %v1010
    %v1015 = vpack.c.bf16 %v1011, %v1011
    %v1016 = vpack.c.bf16 %v1012, %v1012
    %v1017 = vpack.c.bf16 %v1013, %v1013
    %v1018 = vpack.c.bf16 %v1014, %v1014
    %v1022 = vunpack.c.l.b16 %v1015
    %v1023 = vunpack.c.l.b16 %v1016
    %v1024 = vunpack.c.l.b16 %v1017
    %v1025 = vpack.c.b16 %v1023, %v1022
    %v1026 = vpack.c.b16 %v1024, %v1024
    %1029 = vmatpush.bf16.msra.mxu0 %v754
    %1030 = vmatpush.bf16.msra.mxu0 %v753
    %1031 = vmatpush.bf16.msra.mxu0 %v752
    %1032 = vmatpush.bf16.msra.mxu0 %v751
    %1033 = vmatpush.bf16.msra.mxu0 %v750
    %1034 = vmatpush.bf16.msra.mxu0 %v749
    %1035 = vmatpush.bf16.msra.mxu0 %v748
    %1036 = vmatpush.bf16.msra.mxu0 %v747
    %1037 = vmatmul.bf16.gmra.mxu0 %v1025
    %v1038 = vpop.f32.mrf.mxu0
    %v1039 = vadd.f32 0.0, %v1038
    %v1040 = vpop.f32.mrf.mxu0
    %v1041 = vadd.f32 0.0, %v1040
    %1042 = vmatmul.bf16.gmra.mxu0 %v1026
    %v1043 = vpop.f32.mrf.mxu0
    %v1044 = vadd.f32 0.0, %v1043
    %v1045 = vpop.f32.mrf.mxu0
    %1046 = vdwg.mxu0
    %v1047 = vadd.f32 %v782, %v1039
    %v1048 = vadd.f32 %v782, %v1041
    %v1049 = vadd.f32 %v782, %v1044
    %v1051 = vshrl.u32 %v1025, 16
    %v1053 = vrot.slane %v1051, 1
    %v1054 = vshll.u32 %v1025, 16
    %v1056 = vrot.slane %v1054, 2
    %v1057 = vor.u32 %v1053, %v1056
    %v1059 = vshrl.u32 %v1026, 16
    %v1061 = vrot.slane %v1059, 1
    %v1062 = vshll.u32 %v1026, 16
    %v1064 = vrot.slane %v1062, 2
    %v1065 = vor.u32 %v1061, %v1064
    %v1066 = vsel %vm804, %v1057, %v1065
    %1069 = vmatpush.bf16.msra.mxu0 %v863
    %1070 = vmatpush.bf16.msra.mxu0 %v862
    %1071 = vmatpush.bf16.msra.mxu0 %v861
    %1072 = vmatpush.bf16.msra.mxu0 %v860
    %1073 = vmatpush.bf16.msra.mxu0 %v859
    %1074 = vmatpush.bf16.msra.mxu0 %v858
    %1075 = vmatpush.bf16.msra.mxu0 %v857
    %1076 = vmatpush.bf16.msra.mxu0 %v856
    %1077 = vmatmul.bf16.gmra.mxu0 %v1066
    %v1078 = vpop.f32.mrf.mxu0
    %v1079 = vadd.f32 0.0, %v1078
    %v1080 = vpop.f32.mrf.mxu0
    %v1081 = vadd.f32 0.0, %v1080
    %1082 = vmatmul.bf16.gmra.mxu0 %v1065
    %v1083 = vpop.f32.mrf.mxu0
    %v1084 = vadd.f32 0.0, %v1083
    %v1085 = vpop.f32.mrf.mxu0
    %1086 = vdwg.mxu0
    %v1087 = vadd.f32 %v1047, %v1079
    %v1088 = vadd.f32 %v1048, %v1081
    %v1089 = vadd.f32 %v1049, %v1084
    %v1091 = vunpack.c.l.b16 %v1018
    %v1092 = vpack.c.b16 %v1091, %v1024
    %v1093 = vrot.slane %v1025, 3
    %v1094 = vrot.slane %v1092, 3
    %v1095 = vsel %vm913, %v1093, %v1094
    %1098 = vmatpush.bf16.msra.mxu0 %v958
    %1099 = vmatpush.bf16.msra.mxu0 %v957
    %1100 = vmatpush.bf16.msra.mxu0 %v956
    %1101 = vmatpush.bf16.msra.mxu0 %v955
    %1102 = vmatpush.bf16.msra.mxu0 %v954
    %1103 = vmatpush.bf16.msra.mxu0 %v953
    %1104 = vmatpush.bf16.msra.mxu0 %v952
    %1105 = vmatpush.bf16.msra.mxu0 %v951
    %1106 = vmatmul.bf16.gmra.mxu0 %v1095
    %v1107 = vpop.f32.mrf.mxu0
    %v1108 = vadd.f32 0.0, %v1107
    %v1109 = vpop.f32.mrf.mxu0
    %v1110 = vadd.f32 0.0, %v1109
    %1111 = vmatmul.bf16.gmra.mxu0 %v1094
    %v1112 = vpop.f32.mrf.mxu0
    %v1113 = vadd.f32 0.0, %v1112
    %v1114 = vpop.f32.mrf.mxu0
    %1115 = vdwg.mxu0
    %v1116 = vadd.f32 %v1087, %v1108
    %v1117 = vadd.f32 %v1088, %v1110
    %v1118 = vadd.f32 %v1089, %v1113
    %v1122 = vrot.slane %v663, 3
    %v1123 = vrot.slane %v665, 3
    %v1124 = vsel %vm991, %v1122, %v1123
    %v1125 = vrot.slane %v668, 3
    %v1126 = vsel %vm991, %v1123, %v1125
    %v1130 = vadd.f32 %v1116, %v1124
    %v1131 = vadd.f32 %v1117, %v1126
    %v1132 = vadd.f32 %v1118, %v1125
    %vm1133 = vcmp.gt.f32.partialorder %v1000, 0.0
    %vm1134 = vcmp.gt.f32.partialorder %v1001, 0.0
    %vm1135 = vcmp.gt.f32.partialorder %v1002, 0.0
    %v1136 = vmul.f32 %v1000, 0.1
    %v1137 = vmul.f32 %v1001, 0.1
    %v1138 = vmul.f32 %v1002, 0.1
    %v1139 = vsel %vm1133, %v1000, %v1136
    %v1140 = vsel %vm1134, %v1001, %v1137
    %v1141 = vsel %vm1135, %v1002, %v1138
    %v1142 = vpack.c.bf16 %v1139, %v1139
    %v1143 = vpack.c.bf16 %v1140, %v1140
    %v1144 = vpack.c.bf16 %v1141, %v1141
    %v1145 = vld [vmem:[%s6] sm:$0x1]
    %v1146 = vld [vmem:[%s5] sm:$0xf]
    %v1147 = vld [vmem:[%s5 + $0x4] sm:$0xf]
    %v1148 = vld [vmem:[%s5 + $0x8] sm:$0xf]
    %v1149 = vld [vmem:[%s5 + $0xc] sm:$0xf]
    %v1150 = vld [vmem:[%s5 + $0x10] sm:$0xf]
    %v1151 = vld [vmem:[%s5 + $0x14] sm:$0xf]
    %v1152 = vld [vmem:[%s5 + $0x18] sm:$0xf]
    %v1153 = vld [vmem:[%s5 + $0x1c] sm:$0xf]
    %v1154 = vld [vmem:[%s5 + $0x20] sm:$0xf]
    %v1155 = vld [vmem:[%s5 + $0x24] sm:$0xf]
    %v1156 = vld [vmem:[%s5 + $0x28] sm:$0xf]
    %v1157 = vld [vmem:[%s5 + $0x2c] sm:$0xf]
    %v1158 = vld [vmem:[%s5 + $0x30] sm:$0xf]
    %v1159 = vld [vmem:[%s5 + $0x34] sm:$0xf]
    %v1160 = vld [vmem:[%s5 + $0x38] sm:$0xf]
    %v1161 = vld [vmem:[%s5 + $0x3c] sm:$0xf]
    %v1164 = vunpack.c.l.b16 %v1142
    %v1165 = vunpack.c.l.b16 %v1143
    %v1166 = vpack.c.b16 %v1165, %v1164
    %v1184 = vunpack.c.l.b16 %v1146
    %v1185 = vunpack.c.l.b16 %v1147
    %v1186 = vunpack.c.l.b16 %v1148
    %v1187 = vunpack.c.l.b16 %v1149
    %v1188 = vunpack.c.l.b16 %v1150
    %v1189 = vunpack.c.l.b16 %v1151
    %v1190 = vunpack.c.l.b16 %v1152
    %v1191 = vunpack.c.l.b16 %v1153
    %v1192 = vunpack.c.l.b16 %v1154
    %v1193 = vunpack.c.l.b16 %v1155
    %v1194 = vunpack.c.l.b16 %v1156
    %v1195 = vunpack.c.l.b16 %v1157
    %v1196 = vunpack.c.l.b16 %v1158
    %v1197 = vunpack.c.l.b16 %v1159
    %v1198 = vunpack.c.l.b16 %v1160
    %v1199 = vunpack.c.l.b16 %v1161
    %v1200 = vpack.c.b16 %v1185, %v1184
    %v1201 = vpack.c.b16 %v1187, %v1186
    %v1202 = vpack.c.b16 %v1189, %v1188
    %v1203 = vpack.c.b16 %v1191, %v1190
    %v1204 = vpack.c.b16 %v1193, %v1192
    %v1205 = vpack.c.b16 %v1195, %v1194
    %v1206 = vpack.c.b16 %v1197, %v1196
    %v1207 = vpack.c.b16 %v1199, %v1198
    %1216 = vmatpush.bf16.msra.mxu0 %v1207
    %1217 = vmatpush.bf16.msra.mxu0 %v1206
    %1218 = vmatpush.bf16.msra.mxu0 %v1205
    %1219 = vmatpush.bf16.msra.mxu0 %v1204
    %1220 = vmatpush.bf16.msra.mxu0 %v1203
    %1221 = vmatpush.bf16.msra.mxu0 %v1202
    %1222 = vmatpush.bf16.msra.mxu0 %v1201
    %1223 = vmatpush.bf16.msra.mxu0 %v1200
    %1224 = vmatmul.bf16.gmra.mxu0 %v1166
    %v1225 = vpop.f32.mrf.mxu0
    %v1226 = vadd.f32 0.0, %v1225
    %v1227 = vpop.f32.mrf.mxu0
    %v1228 = vadd.f32 0.0, %v1227
    %1229 = vdwg.mxu0
    %v1231 = vperm.slane %v1145, 0
    %v1233 = vadd.f32 %v1231, %v1226
    %v1234 = vadd.f32 %v1231, %v1228
    %s1235 = scalar_lea.vmem %s5, 64
    %v1236 = vld [vmem:[%s1235] sm:$0xf]
    %v1237 = vld [vmem:[%s1235 + $0x4] sm:$0xf]
    %v1238 = vld [vmem:[%s1235 + $0x8] sm:$0xf]
    %v1239 = vld [vmem:[%s1235 + $0xc] sm:$0xf]
    %v1240 = vld [vmem:[%s1235 + $0x10] sm:$0xf]
    %v1241 = vld [vmem:[%s1235 + $0x14] sm:$0xf]
    %v1242 = vld [vmem:[%s1235 + $0x18] sm:$0xf]
    %v1243 = vld [vmem:[%s1235 + $0x1c] sm:$0xf]
    %v1244 = vld [vmem:[%s1235 + $0x20] sm:$0xf]
    %v1245 = vld [vmem:[%s1235 + $0x24] sm:$0xf]
    %v1246 = vld [vmem:[%s1235 + $0x28] sm:$0xf]
    %v1247 = vld [vmem:[%s1235 + $0x2c] sm:$0xf]
    %v1248 = vld [vmem:[%s1235 + $0x30] sm:$0xf]
    %v1249 = vld [vmem:[%s1235 + $0x34] sm:$0xf]
    %v1250 = vld [vmem:[%s1235 + $0x38] sm:$0xf]
    %v1251 = vld [vmem:[%s1235 + $0x3c] sm:$0xf]
    %v1253 = vunpack.c.l.b16 %v1144
    %v1254 = vpack.c.b16 %v1253, %v1253
    %v1256 = vshrl.u32 %v1166, 16
    %v1258 = vrot.slane %v1256, 1
    %v1259 = vshll.u32 %v1166, 16
    %v1261 = vrot.slane %v1259, 2
    %v1262 = vor.u32 %v1258, %v1261
    %v1264 = vshll.u32 %v1254, 16
    %v1266 = vrot.slane %v1264, 2
    %v1267 = vsel %vm804, %v1262, %v1266
    %v1285 = vunpack.c.l.b16 %v1236
    %v1286 = vunpack.c.l.b16 %v1237
    %v1287 = vunpack.c.l.b16 %v1238
    %v1288 = vunpack.c.l.b16 %v1239
    %v1289 = vunpack.c.l.b16 %v1240
    %v1290 = vunpack.c.l.b16 %v1241
    %v1291 = vunpack.c.l.b16 %v1242
    %v1292 = vunpack.c.l.b16 %v1243
    %v1293 = vunpack.c.l.b16 %v1244
    %v1294 = vunpack.c.l.b16 %v1245
    %v1295 = vunpack.c.l.b16 %v1246
    %v1296 = vunpack.c.l.b16 %v1247
    %v1297 = vunpack.c.l.b16 %v1248
    %v1298 = vunpack.c.l.b16 %v1249
    %v1299 = vunpack.c.l.b16 %v1250
    %v1300 = vunpack.c.l.b16 %v1251
    %v1301 = vpack.c.b16 %v1286, %v1285
    %v1302 = vpack.c.b16 %v1288, %v1287
    %v1303 = vpack.c.b16 %v1290, %v1289
    %v1304 = vpack.c.b16 %v1292, %v1291
    %v1305 = vpack.c.b16 %v1294, %v1293
    %v1306 = vpack.c.b16 %v1296, %v1295
    %v1307 = vpack.c.b16 %v1298, %v1297
    %v1308 = vpack.c.b16 %v1300, %v1299
    %1317 = vmatpush.bf16.msra.mxu0 %v1308
    %1318 = vmatpush.bf16.msra.mxu0 %v1307
    %1319 = vmatpush.bf16.msra.mxu0 %v1306
    %1320 = vmatpush.bf16.msra.mxu0 %v1305
    %1321 = vmatpush.bf16.msra.mxu0 %v1304
    %1322 = vmatpush.bf16.msra.mxu0 %v1303
    %1323 = vmatpush.bf16.msra.mxu0 %v1302
    %1324 = vmatpush.bf16.msra.mxu0 %v1301
    %1325 = vmatmul.bf16.gmra.mxu0 %v1267
    %v1326 = vpop.f32.mrf.mxu0
    %v1327 = vadd.f32 0.0, %v1326
    %v1328 = vpop.f32.mrf.mxu0
    %v1329 = vadd.f32 0.0, %v1328
    %1330 = vdwg.mxu0
    %v1331 = vadd.f32 %v1233, %v1327
    %v1332 = vadd.f32 %v1234, %v1329
    %s1333 = scalar_lea.vmem %s5, 128
    %v1334 = vld [vmem:[%s1333] sm:$0xf]
    %v1335 = vld [vmem:[%s1333 + $0x4] sm:$0xf]
    %v1336 = vld [vmem:[%s1333 + $0x8] sm:$0xf]
    %v1337 = vld [vmem:[%s1333 + $0xc] sm:$0xf]
    %v1338 = vld [vmem:[%s1333 + $0x10] sm:$0xf]
    %v1339 = vld [vmem:[%s1333 + $0x14] sm:$0xf]
    %v1340 = vld [vmem:[%s1333 + $0x18] sm:$0xf]
    %v1341 = vld [vmem:[%s1333 + $0x1c] sm:$0xf]
    %v1342 = vld [vmem:[%s1333 + $0x20] sm:$0xf]
    %v1343 = vld [vmem:[%s1333 + $0x24] sm:$0xf]
    %v1344 = vld [vmem:[%s1333 + $0x28] sm:$0xf]
    %v1345 = vld [vmem:[%s1333 + $0x2c] sm:$0xf]
    %v1346 = vld [vmem:[%s1333 + $0x30] sm:$0xf]
    %v1347 = vld [vmem:[%s1333 + $0x34] sm:$0xf]
    %v1348 = vld [vmem:[%s1333 + $0x38] sm:$0xf]
    %v1349 = vld [vmem:[%s1333 + $0x3c] sm:$0xf]
    %v1350 = vrot.slane %v1166, 3
    %v1351 = vrot.slane %v1254, 3
    %v1352 = vsel %vm913, %v1350, %v1351
    %v1370 = vunpack.c.l.b16 %v1334
    %v1371 = vunpack.c.l.b16 %v1335
    %v1372 = vunpack.c.l.b16 %v1336
    %v1373 = vunpack.c.l.b16 %v1337
    %v1374 = vunpack.c.l.b16 %v1338
    %v1375 = vunpack.c.l.b16 %v1339
    %v1376 = vunpack.c.l.b16 %v1340
    %v1377 = vunpack.c.l.b16 %v1341
    %v1378 = vunpack.c.l.b16 %v1342
    %v1379 = vunpack.c.l.b16 %v1343
    %v1380 = vunpack.c.l.b16 %v1344
    %v1381 = vunpack.c.l.b16 %v1345
    %v1382 = vunpack.c.l.b16 %v1346
    %v1383 = vunpack.c.l.b16 %v1347
    %v1384 = vunpack.c.l.b16 %v1348
    %v1385 = vunpack.c.l.b16 %v1349
    %v1386 = vpack.c.b16 %v1371, %v1370
    %v1387 = vpack.c.b16 %v1373, %v1372
    %v1388 = vpack.c.b16 %v1375, %v1374
    %v1389 = vpack.c.b16 %v1377, %v1376
    %v1390 = vpack.c.b16 %v1379, %v1378
    %v1391 = vpack.c.b16 %v1381, %v1380
    %v1392 = vpack.c.b16 %v1383, %v1382
    %v1393 = vpack.c.b16 %v1385, %v1384
    %1402 = vmatpush.bf16.msra.mxu0 %v1393
    %1403 = vmatpush.bf16.msra.mxu0 %v1392
    %1404 = vmatpush.bf16.msra.mxu0 %v1391
    %1405 = vmatpush.bf16.msra.mxu0 %v1390
    %1406 = vmatpush.bf16.msra.mxu0 %v1389
    %1407 = vmatpush.bf16.msra.mxu0 %v1388
    %1408 = vmatpush.bf16.msra.mxu0 %v1387
    %1409 = vmatpush.bf16.msra.mxu0 %v1386
    %1410 = vmatmul.bf16.gmra.mxu0 %v1352
    %v1411 = vpop.f32.mrf.mxu0
    %v1412 = vadd.f32 0.0, %v1411
    %v1413 = vpop.f32.mrf.mxu0
    %v1414 = vadd.f32 0.0, %v1413
    %1415 = vdwg.mxu0
    %v1416 = vadd.f32 %v1331, %v1412
    %v1417 = vadd.f32 %v1332, %v1414
    %v1421 = vrot.slane %v1000, 3
    %v1422 = vrot.slane %v1001, 3
    %v1423 = vsel %vm991, %v1421, %v1422
    %v1424 = vrot.slane %v1002, 3
    %v1425 = vsel %vm991, %v1422, %v1424
    %v1428 = vadd.f32 %v1416, %v1423
    %v1429 = vadd.f32 %v1417, %v1425
    %vm1430 = vcmp.gt.f32.partialorder %v1130, 0.0
    %vm1431 = vcmp.gt.f32.partialorder %v1131, 0.0
    %vm1432 = vcmp.gt.f32.partialorder %v1132, 0.0
    %v1433 = vmul.f32 %v1130, 0.1
    %v1434 = vmul.f32 %v1131, 0.1
    %v1435 = vmul.f32 %v1132, 0.1
    %v1436 = vsel %vm1430, %v1130, %v1433
    %v1437 = vsel %vm1431, %v1131, %v1434
    %v1438 = vsel %vm1432, %v1132, %v1435
    %v1439 = vpack.c.bf16 %v1436, %v1436
    %v1440 = vpack.c.bf16 %v1437, %v1437
    %v1441 = vpack.c.bf16 %v1438, %v1438
    %v1444 = vunpack.c.l.b16 %v1439
    %v1445 = vunpack.c.l.b16 %v1440
    %v1446 = vpack.c.b16 %v1445, %v1444
    %1448 = vmatpush.bf16.msra.mxu0 %v1207
    %1449 = vmatpush.bf16.msra.mxu0 %v1206
    %1450 = vmatpush.bf16.msra.mxu0 %v1205
    %1451 = vmatpush.bf16.msra.mxu0 %v1204
    %1452 = vmatpush.bf16.msra.mxu0 %v1203
    %1453 = vmatpush.bf16.msra.mxu0 %v1202
    %1454 = vmatpush.bf16.msra.mxu0 %v1201
    %1455 = vmatpush.bf16.msra.mxu0 %v1200
    %1456 = vmatmul.bf16.gmra.mxu0 %v1446
    %v1457 = vpop.f32.mrf.mxu0
    %v1458 = vadd.f32 0.0, %v1457
    %v1459 = vpop.f32.mrf.mxu0
    %v1460 = vadd.f32 0.0, %v1459
    %1461 = vdwg.mxu0
    %v1462 = vadd.f32 %v1231, %v1458
    %v1463 = vadd.f32 %v1231, %v1460
    %v1465 = vunpack.c.l.b16 %v1441
    %v1466 = vpack.c.b16 %v1465, %v1465
    %v1468 = vshrl.u32 %v1446, 16
    %v1470 = vrot.slane %v1468, 1
    %v1471 = vshll.u32 %v1446, 16
    %v1473 = vrot.slane %v1471, 2
    %v1474 = vor.u32 %v1470, %v1473
    %v1476 = vshll.u32 %v1466, 16
    %v1478 = vrot.slane %v1476, 2
    %v1479 = vsel %vm804, %v1474, %v1478
    %1481 = vmatpush.bf16.msra.mxu0 %v1308
    %1482 = vmatpush.bf16.msra.mxu0 %v1307
    %1483 = vmatpush.bf16.msra.mxu0 %v1306
    %1484 = vmatpush.bf16.msra.mxu0 %v1305
    %1485 = vmatpush.bf16.msra.mxu0 %v1304
    %1486 = vmatpush.bf16.msra.mxu0 %v1303
    %1487 = vmatpush.bf16.msra.mxu0 %v1302
    %1488 = vmatpush.bf16.msra.mxu0 %v1301
    %1489 = vmatmul.bf16.gmra.mxu0 %v1479
    %v1490 = vpop.f32.mrf.mxu0
    %v1491 = vadd.f32 0.0, %v1490
    %v1492 = vpop.f32.mrf.mxu0
    %v1493 = vadd.f32 0.0, %v1492
    %1494 = vdwg.mxu0
    %v1495 = vadd.f32 %v1462, %v1491
    %v1496 = vadd.f32 %v1463, %v1493
    %v1497 = vrot.slane %v1446, 3
    %v1498 = vrot.slane %v1466, 3
    %v1499 = vsel %vm913, %v1497, %v1498
    %1501 = vmatpush.bf16.msra.mxu0 %v1393
    %1502 = vmatpush.bf16.msra.mxu0 %v1392
    %1503 = vmatpush.bf16.msra.mxu0 %v1391
    %1504 = vmatpush.bf16.msra.mxu0 %v1390
    %1505 = vmatpush.bf16.msra.mxu0 %v1389
    %1506 = vmatpush.bf16.msra.mxu0 %v1388
    %1507 = vmatpush.bf16.msra.mxu0 %v1387
    %1508 = vmatpush.bf16.msra.mxu0 %v1386
    %1509 = vmatmul.bf16.gmra.mxu0 %v1499
    %v1510 = vpop.f32.mrf.mxu0
    %v1511 = vadd.f32 0.0, %v1510
    %v1512 = vpop.f32.mrf.mxu0
    %v1513 = vadd.f32 0.0, %v1512
    %1514 = vdwg.mxu0
    %v1515 = vadd.f32 %v1495, %v1511
    %v1516 = vadd.f32 %v1496, %v1513
    %v1520 = vrot.slane %v1130, 3
    %v1521 = vrot.slane %v1131, 3
    %v1522 = vsel %vm991, %v1520, %v1521
    %v1523 = vrot.slane %v1132, 3
    %v1524 = vsel %vm991, %v1521, %v1523
    %v1527 = vadd.f32 %v1515, %v1522
    %v1528 = vadd.f32 %v1516, %v1524
    %vm1529 = vcmask 1045504
    %v1530 = vsel %vm1529, %v1429, 0.0
    %v1531 = vadd.f32 %v1428, %v1530
    %v1532 = vrot.slane %v1531, 4
    %v1533 = vadd.f32 %v1531, %v1532
    %v1534 = vrot.slane %v1533, 2
    %v1535 = vadd.f32 %v1533, %v1534
    %v1536 = vrot.slane %v1535, 1
    %v1537 = vadd.f32 %v1535, %v1536
    %v1538 = vrcp.pop 14.0
    %v1539 = vmul.f32 14.0, %v1538
    %v1540 = vsub.f32 1.0, %v1539
    %v1541 = vmul.f32 %v1538, %v1540
    %v1542 = vadd.f32 %v1538, %v1541
    %vm1543 = vweird.f32 %v1538
    %v1544 = vsel %vm1543, %v1538, %v1542
    %v1545 = vmul.f32 %v1537, %v1544
    %v1546 = vsel %vm1529, %v1528, 0.0
    %v1547 = vadd.f32 %v1527, %v1546
    %v1548 = vrot.slane %v1547, 4
    %v1549 = vadd.f32 %v1547, %v1548
    %v1550 = vrot.slane %v1549, 2
    %v1551 = vadd.f32 %v1549, %v1550
    %v1552 = vrot.slane %v1551, 1
    %v1553 = vadd.f32 %v1551, %v1552
    %v1554 = vmul.f32 %v1553, %v1544
    %vm1555 = vcmask 1040384
    %v1556 = vsel %vm1555, %v1545, %v1554
    %v1557 = vpack.c.bf16 %v1556, %v1556
    %v1558 = vld [vmem:[#allocation5] sm:$0xf]
    %v1559 = vld [vmem:[#allocation5 + $0x4] sm:$0xf]
    %v1560 = vld [vmem:[#allocation5 + $0x8] sm:$0xf]
    %v1561 = vld [vmem:[#allocation5 + $0xc] sm:$0xf]
    %v1562 = vld [vmem:[#allocation5 + $0x10] sm:$0xf]
    %v1563 = vld [vmem:[#allocation5 + $0x14] sm:$0xf]
    %v1564 = vld [vmem:[#allocation5 + $0x18] sm:$0xf]
    %v1565 = vld [vmem:[#allocation5 + $0x1c] sm:$0xf]
    %v1566 = vld [vmem:[#allocation5 + $0x20] sm:$0xf]
    %v1567 = vld [vmem:[#allocation5 + $0x24] sm:$0xf]
    %v1568 = vld [vmem:[#allocation5 + $0x28] sm:$0xf]
    %v1569 = vld [vmem:[#allocation5 + $0x2c] sm:$0xf]
    %v1570 = vld [vmem:[#allocation5 + $0x30] sm:$0xf]
    %v1571 = vld [vmem:[#allocation5 + $0x34] sm:$0xf]
    %v1572 = vld [vmem:[#allocation5 + $0x38] sm:$0xf]
    %v1573 = vld [vmem:[#allocation5 + $0x3c] sm:$0xf]
    %v1574 = vld [vmem:[%s8] sm:$0x1]
    %v1576 = vperm.slane %v1574, 0
    %v1594 = vunpack.c.l.b16 %v1558
    %v1595 = vunpack.c.l.b16 %v1559
    %v1596 = vunpack.c.l.b16 %v1560
    %v1597 = vunpack.c.l.b16 %v1561
    %v1598 = vunpack.c.l.b16 %v1562
    %v1599 = vunpack.c.l.b16 %v1563
    %v1600 = vunpack.c.l.b16 %v1564
    %v1601 = vunpack.c.l.b16 %v1565
    %v1602 = vunpack.c.l.b16 %v1566
    %v1603 = vunpack.c.l.b16 %v1567
    %v1604 = vunpack.c.l.b16 %v1568
    %v1605 = vunpack.c.l.b16 %v1569
    %v1606 = vunpack.c.l.b16 %v1570
    %v1607 = vunpack.c.l.b16 %v1571
    %v1608 = vunpack.c.l.b16 %v1572
    %v1609 = vunpack.c.l.b16 %v1573
    %v1610 = vpack.c.b16 %v1595, %v1594
    %v1611 = vpack.c.b16 %v1597, %v1596
    %v1612 = vpack.c.b16 %v1599, %v1598
    %v1613 = vpack.c.b16 %v1601, %v1600
    %v1614 = vpack.c.b16 %v1603, %v1602
    %v1615 = vpack.c.b16 %v1605, %v1604
    %v1616 = vpack.c.b16 %v1607, %v1606
    %v1617 = vpack.c.b16 %v1609, %v1608
    %1626 = vmatpush.bf16.msra.mxu0 %v1617
    %1627 = vmatpush.bf16.msra.mxu0 %v1616
    %1628 = vmatpush.bf16.msra.mxu0 %v1615
    %1629 = vmatpush.bf16.msra.mxu0 %v1614
    %1630 = vmatpush.bf16.msra.mxu0 %v1613
    %1631 = vmatpush.bf16.msra.mxu0 %v1612
    %1632 = vmatpush.bf16.msra.mxu0 %v1611
    %1633 = vmatpush.bf16.msra.mxu0 %v1610
    %1634 = vmatmul.bf16.gmra.mxu0 %v1557
    %v1635 = vpop.f32.mrf.mxu0
    %v1636 = vadd.f32 %v1576, %v1635
    %v1637 = vpop.f32.mrf.mxu0
    %1638 = vdwg.mxu0
    %vm1639 = vcmp.gt.f32.partialorder %v1636, 0.0
    %v1640 = vmul.f32 %v1636, 0.1
    %v1641 = vsel %vm1639, %v1636, %v1640
    %v1642 = vpack.c.bf16 %v1641, %v1641
    %v1643 = vld [vmem:[#allocation8] sm:$0xf]
    %v1644 = vld [vmem:[#allocation8 + $0x4] sm:$0xf]
    %v1645 = vld [vmem:[#allocation8 + $0x8] sm:$0xf]
    %v1646 = vld [vmem:[#allocation8 + $0xc] sm:$0xf]
    %v1647 = vld [vmem:[#allocation8 + $0x10] sm:$0xf]
    %v1648 = vld [vmem:[#allocation8 + $0x14] sm:$0xf]
    %v1649 = vld [vmem:[#allocation8 + $0x18] sm:$0xf]
    %v1650 = vld [vmem:[#allocation8 + $0x1c] sm:$0xf]
    %v1651 = vld [vmem:[#allocation8 + $0x20] sm:$0xf]
    %v1652 = vld [vmem:[#allocation8 + $0x24] sm:$0xf]
    %v1653 = vld [vmem:[#allocation8 + $0x28] sm:$0xf]
    %v1654 = vld [vmem:[#allocation8 + $0x2c] sm:$0xf]
    %v1655 = vld [vmem:[#allocation8 + $0x30] sm:$0xf]
    %v1656 = vld [vmem:[#allocation8 + $0x34] sm:$0xf]
    %v1657 = vld [vmem:[#allocation8 + $0x38] sm:$0xf]
    %v1658 = vld [vmem:[#allocation8 + $0x3c] sm:$0xf]
    %v1659 = vld [vmem:[%s10] sm:$0x1]
    %v1661 = vperm.slane %v1659, 0
    %v1679 = vunpack.c.l.b16 %v1643
    %v1680 = vunpack.c.l.b16 %v1644
    %v1681 = vunpack.c.l.b16 %v1645
    %v1682 = vunpack.c.l.b16 %v1646
    %v1683 = vunpack.c.l.b16 %v1647
    %v1684 = vunpack.c.l.b16 %v1648
    %v1685 = vunpack.c.l.b16 %v1649
    %v1686 = vunpack.c.l.b16 %v1650
    %v1687 = vunpack.c.l.b16 %v1651
    %v1688 = vunpack.c.l.b16 %v1652
    %v1689 = vunpack.c.l.b16 %v1653
    %v1690 = vunpack.c.l.b16 %v1654
    %v1691 = vunpack.c.l.b16 %v1655
    %v1692 = vunpack.c.l.b16 %v1656
    %v1693 = vunpack.c.l.b16 %v1657
    %v1694 = vunpack.c.l.b16 %v1658
    %v1695 = vpack.c.b16 %v1680, %v1679
    %v1696 = vpack.c.b16 %v1682, %v1681
    %v1697 = vpack.c.b16 %v1684, %v1683
    %v1698 = vpack.c.b16 %v1686, %v1685
    %v1699 = vpack.c.b16 %v1688, %v1687
    %v1700 = vpack.c.b16 %v1690, %v1689
    %v1701 = vpack.c.b16 %v1692, %v1691
    %v1702 = vpack.c.b16 %v1694, %v1693
    %1711 = vmatpush.bf16.msra.mxu0 %v1702
    %1712 = vmatpush.bf16.msra.mxu0 %v1701
    %1713 = vmatpush.bf16.msra.mxu0 %v1700
    %1714 = vmatpush.bf16.msra.mxu0 %v1699
    %1715 = vmatpush.bf16.msra.mxu0 %v1698
    %1716 = vmatpush.bf16.msra.mxu0 %v1697
    %1717 = vmatpush.bf16.msra.mxu0 %v1696
    %1718 = vmatpush.bf16.msra.mxu0 %v1695
    %1719 = vmatmul.bf16.gmra.mxu0 %v1642
    %v1720 = vpop.f32.mrf.mxu0
    %v1721 = vadd.f32 %v1661, %v1720
    %v1722 = vpop.f32.mrf.mxu0
    %1723 = vdwg.mxu0
    %v1724 = vadd.f32 %v1556, %v1721
    %vm1725 = vcmp.gt.f32.partialorder %v1724, 0.0
    %v1726 = vmul.f32 %v1724, 0.1
    %v1727 = vsel %vm1725, %v1724, %v1726
    %v1728 = vpack.c.bf16 %v1727, %v1727
    %s1729 = smul.u32 4, 16
    %s1730 = smul.u32 %s1729, 14
    %s1731 = sshll.u32 %s1730, 4
    %1732 = dma.done [#allocation4], %s1731
    %s1733 = smul.u32 %s1729, 4
    %s1734 = sshll.u32 %s1733, 4
    %1735 = dma.done %s105, %s1734
    %v1736 = vld [vmem:[#allocation2] sm:$0xff]
    %v1737 = vld [vmem:[#allocation2 + $0x8] sm:$0xff]
    %v1738 = vld [vmem:[#allocation2 + $0x10] sm:$0xff]
    %v1739 = vld [vmem:[#allocation2 + $0x18] sm:$0xff]
    %v1740 = vld [vmem:[#allocation2 + $0x20] sm:$0xff]
    %v1741 = vld [vmem:[#allocation2 + $0x28] sm:$0xff]
    %v1742 = vld [vmem:[#allocation2 + $0x30] sm:$0xff]
    %v1743 = vld [vmem:[#allocation2 + $0x38] sm:$0xff]
    %v1744 = vld [vmem:[#allocation2 + $0x40] sm:$0xff]
    %v1745 = vld [vmem:[#allocation2 + $0x48] sm:$0xff]
    %v1746 = vld [vmem:[#allocation2 + $0x50] sm:$0xff]
    %v1747 = vld [vmem:[#allocation2 + $0x58] sm:$0xff]
    %v1748 = vld [vmem:[#allocation2 + $0x60] sm:$0xff]
    %v1749 = vld [vmem:[#allocation2 + $0x68] sm:$0xff]
    %v1750 = vld [vmem:[#allocation2 + $0x70] sm:$0xff]
    %v1751 = vld [vmem:[#allocation2 + $0x78] sm:$0xff]
    %v1752 = vld [vmem:[#allocation2 + $0x80] sm:$0xff]
    %v1753 = vld [vmem:[#allocation2 + $0x88] sm:$0xff]
    %v1754 = vld [vmem:[#allocation2 + $0x90] sm:$0xff]
    %v1755 = vld [vmem:[#allocation2 + $0x98] sm:$0xff]
    %v1756 = vld [vmem:[#allocation2 + $0xa0] sm:$0xff]
    %v1757 = vld [vmem:[#allocation2 + $0xa8] sm:$0xff]
    %v1758 = vld [vmem:[#allocation2 + $0xb0] sm:$0xff]
    %v1759 = vld [vmem:[#allocation2 + $0xb8] sm:$0xff]
    %v1760 = vld [vmem:[#allocation2 + $0xc0] sm:$0xff]
    %v1761 = vld [vmem:[#allocation2 + $0xc8] sm:$0xff]
    %v1762 = vld [vmem:[#allocation2 + $0xd0] sm:$0xff]
    %v1763 = vld [vmem:[#allocation2 + $0xd8] sm:$0xff]
    %v1764 = vld [vmem:[#allocation2 + $0xe0] sm:$0xff]
    %v1765 = vld [vmem:[#allocation2 + $0xe8] sm:$0xff]
    %v1766 = vld [vmem:[#allocation2 + $0xf0] sm:$0xff]
    %v1767 = vld [vmem:[#allocation2 + $0xf8] sm:$0xff]
    %v1768 = vld [vmem:[#allocation2 + $0x100] sm:$0xff]
    %v1769 = vld [vmem:[#allocation2 + $0x108] sm:$0xff]
    %v1770 = vld [vmem:[#allocation2 + $0x110] sm:$0xff]
    %v1771 = vld [vmem:[#allocation2 + $0x118] sm:$0xff]
    %v1772 = vld [vmem:[#allocation2 + $0x120] sm:$0xff]
    %v1773 = vld [vmem:[#allocation2 + $0x128] sm:$0xff]
    %v1774 = vld [vmem:[#allocation2 + $0x130] sm:$0xff]
    %v1775 = vld [vmem:[#allocation2 + $0x138] sm:$0xff]
    %v1776 = vld [vmem:[#allocation2 + $0x140] sm:$0xff]
    %v1777 = vld [vmem:[#allocation2 + $0x148] sm:$0xff]
    %v1778 = vld [vmem:[#allocation2 + $0x150] sm:$0xff]
    %v1779 = vld [vmem:[#allocation2 + $0x158] sm:$0xff]
    %v1780 = vld [vmem:[#allocation2 + $0x160] sm:$0xff]
    %v1781 = vld [vmem:[#allocation2 + $0x168] sm:$0xff]
    %v1782 = vld [vmem:[#allocation2 + $0x170] sm:$0xff]
    %v1783 = vld [vmem:[#allocation2 + $0x178] sm:$0xff]
    %v1784 = vld [vmem:[#allocation2 + $0x180] sm:$0xff]
    %v1785 = vld [vmem:[#allocation2 + $0x188] sm:$0xff]
    %v1786 = vld [vmem:[#allocation2 + $0x190] sm:$0xff]
    %v1787 = vld [vmem:[#allocation2 + $0x198] sm:$0xff]
    %v1788 = vld [vmem:[#allocation2 + $0x1a0] sm:$0xff]
    %v1789 = vld [vmem:[#allocation2 + $0x1a8] sm:$0xff]
    %v1790 = vld [vmem:[#allocation2 + $0x1b0] sm:$0xff]
    %v1791 = vld [vmem:[#allocation2 + $0x1b8] sm:$0xff]
    %v1792 = vld [vmem:[#allocation2 + $0x1c0] sm:$0xff]
    %v1793 = vld [vmem:[#allocation2 + $0x1c8] sm:$0xff]
    %v1794 = vld [vmem:[#allocation2 + $0x1d0] sm:$0xff]
    %v1795 = vld [vmem:[#allocation2 + $0x1d8] sm:$0xff]
    %v1796 = vld [vmem:[#allocation2 + $0x1e0] sm:$0xff]
    %v1797 = vld [vmem:[#allocation2 + $0x1e8] sm:$0xff]
    %v1798 = vld [vmem:[#allocation2 + $0x1f0] sm:$0xff]
    %v1799 = vld [vmem:[#allocation2 + $0x1f8] sm:$0xff]
    %v1800 = vld [vmem:[#allocation2 + $0x200] sm:$0xff]
    %v1801 = vld [vmem:[#allocation2 + $0x208] sm:$0xff]
    %v1802 = vld [vmem:[#allocation2 + $0x210] sm:$0xff]
    %v1803 = vld [vmem:[#allocation2 + $0x218] sm:$0xff]
    %v1804 = vld [vmem:[#allocation2 + $0x220] sm:$0xff]
    %v1805 = vld [vmem:[#allocation2 + $0x228] sm:$0xff]
    %v1806 = vld [vmem:[#allocation2 + $0x230] sm:$0xff]
    %v1807 = vld [vmem:[#allocation2 + $0x238] sm:$0xff]
    %v1808 = vld [vmem:[#allocation2 + $0x240] sm:$0xff]
    %v1809 = vld [vmem:[#allocation2 + $0x248] sm:$0xff]
    %v1810 = vld [vmem:[#allocation2 + $0x250] sm:$0xff]
    %v1811 = vld [vmem:[#allocation2 + $0x258] sm:$0xff]
    %v1812 = vld [vmem:[#allocation2 + $0x260] sm:$0xff]
    %v1813 = vld [vmem:[#allocation2 + $0x268] sm:$0xff]
    %v1814 = vld [vmem:[#allocation2 + $0x270] sm:$0xff]
    %v1815 = vld [vmem:[#allocation2 + $0x278] sm:$0xff]
    %v1816 = vld [vmem:[#allocation2 + $0x280] sm:$0xff]
    %v1817 = vld [vmem:[#allocation2 + $0x288] sm:$0xff]
    %v1818 = vld [vmem:[#allocation2 + $0x290] sm:$0xff]
    %v1819 = vld [vmem:[#allocation2 + $0x298] sm:$0xff]
    %v1820 = vld [vmem:[#allocation2 + $0x2a0] sm:$0xff]
    %v1821 = vld [vmem:[#allocation2 + $0x2a8] sm:$0xff]
    %v1822 = vld [vmem:[#allocation2 + $0x2b0] sm:$0xff]
    %v1823 = vld [vmem:[#allocation2 + $0x2b8] sm:$0xff]
    %v1824 = vld [vmem:[#allocation2 + $0x2c0] sm:$0xff]
    %v1825 = vld [vmem:[#allocation2 + $0x2c8] sm:$0xff]
    %v1826 = vld [vmem:[#allocation2 + $0x2d0] sm:$0xff]
    %v1827 = vld [vmem:[#allocation2 + $0x2d8] sm:$0xff]
    %v1828 = vld [vmem:[#allocation2 + $0x2e0] sm:$0xff]
    %v1829 = vld [vmem:[#allocation2 + $0x2e8] sm:$0xff]
    %v1830 = vld [vmem:[#allocation2 + $0x2f0] sm:$0xff]
    %v1831 = vld [vmem:[#allocation2 + $0x2f8] sm:$0xff]
    %v1832 = vld [vmem:[#allocation2 + $0x300] sm:$0xff]
    %v1833 = vld [vmem:[#allocation2 + $0x308] sm:$0xff]
    %v1834 = vld [vmem:[#allocation2 + $0x310] sm:$0xff]
    %v1835 = vld [vmem:[#allocation2 + $0x318] sm:$0xff]
    %v1836 = vld [vmem:[#allocation2 + $0x320] sm:$0xff]
    %v1837 = vld [vmem:[#allocation2 + $0x328] sm:$0xff]
    %v1838 = vld [vmem:[#allocation2 + $0x330] sm:$0xff]
    %v1839 = vld [vmem:[#allocation2 + $0x338] sm:$0xff]
    %v1840 = vld [vmem:[#allocation2 + $0x340] sm:$0xff]
    %v1841 = vld [vmem:[#allocation2 + $0x348] sm:$0xff]
    %v1842 = vld [vmem:[#allocation2 + $0x350] sm:$0xff]
    %v1843 = vld [vmem:[#allocation2 + $0x358] sm:$0xff]
    %v1844 = vld [vmem:[#allocation2 + $0x360] sm:$0xff]
    %v1845 = vld [vmem:[#allocation2 + $0x368] sm:$0xff]
    %v1846 = vld [vmem:[#allocation2 + $0x370] sm:$0xff]
    %v1847 = vld [vmem:[#allocation2 + $0x378] sm:$0xff]
    %v1848 = vld [vmem:[#allocation10] sm:$0xff]
    %v1849 = vld [vmem:[#allocation10 + $0x8] sm:$0x3f]
    %v1852 = vperm.slane %v1848, 0
    %v1853 = vperm.slane %v1848, 1
    %v1854 = vperm.slane %v1848, 2
    %v1855 = vperm.slane %v1848, 3
    %v1856 = vperm.slane %v1848, 4
    %v1857 = vperm.slane %v1848, 5
    %v1858 = vperm.slane %v1848, 6
    %v1859 = vperm.slane %v1848, 7
    %v1860 = vperm.slane %v1849, 0
    %v1861 = vperm.slane %v1849, 1
    %v1862 = vperm.slane %v1849, 2
    %v1863 = vperm.slane %v1849, 3
    %v1864 = vperm.slane %v1849, 4
    %v1865 = vperm.slane %v1849, 5
    %v1992 = vunpack.c.l.b16 %v1736
    %v1993 = vunpack.c.h.b16 %v1736
    %v1994 = vunpack.c.l.b16 %v1737
    %v1995 = vunpack.c.h.b16 %v1737
    %v1996 = vunpack.c.l.b16 %v1738
    %v1997 = vunpack.c.h.b16 %v1738
    %v1998 = vunpack.c.l.b16 %v1739
    %v1999 = vunpack.c.h.b16 %v1739
    %v2000 = vunpack.c.l.b16 %v1740
    %v2001 = vunpack.c.h.b16 %v1740
    %v2002 = vunpack.c.l.b16 %v1741
    %v2003 = vunpack.c.h.b16 %v1741
    %v2004 = vunpack.c.l.b16 %v1742
    %v2005 = vunpack.c.h.b16 %v1742
    %v2006 = vunpack.c.l.b16 %v1743
    %v2007 = vunpack.c.h.b16 %v1743
    %v2008 = vunpack.c.l.b16 %v1744
    %v2009 = vunpack.c.h.b16 %v1744
    %v2010 = vunpack.c.l.b16 %v1745
    %v2011 = vunpack.c.h.b16 %v1745
    %v2012 = vunpack.c.l.b16 %v1746
    %v2013 = vunpack.c.h.b16 %v1746
    %v2014 = vunpack.c.l.b16 %v1747
    %v2015 = vunpack.c.h.b16 %v1747
    %v2016 = vunpack.c.l.b16 %v1748
    %v2017 = vunpack.c.h.b16 %v1748
    %v2018 = vunpack.c.l.b16 %v1749
    %v2019 = vunpack.c.h.b16 %v1749
    %v2020 = vunpack.c.l.b16 %v1750
    %v2021 = vunpack.c.h.b16 %v1750
    %v2022 = vunpack.c.l.b16 %v1751
    %v2023 = vunpack.c.h.b16 %v1751
    %v2024 = vunpack.c.l.b16 %v1752
    %v2025 = vunpack.c.h.b16 %v1752
    %v2026 = vunpack.c.l.b16 %v1753
    %v2027 = vunpack.c.h.b16 %v1753
    %v2028 = vunpack.c.l.b16 %v1754
    %v2029 = vunpack.c.h.b16 %v1754
    %v2030 = vunpack.c.l.b16 %v1755
    %v2031 = vunpack.c.h.b16 %v1755
    %v2032 = vunpack.c.l.b16 %v1756
    %v2033 = vunpack.c.h.b16 %v1756
    %v2034 = vunpack.c.l.b16 %v1757
    %v2035 = vunpack.c.h.b16 %v1757
    %v2036 = vunpack.c.l.b16 %v1758
    %v2037 = vunpack.c.h.b16 %v1758
    %v2038 = vunpack.c.l.b16 %v1759
    %v2039 = vunpack.c.h.b16 %v1759
    %v2040 = vunpack.c.l.b16 %v1760
    %v2041 = vunpack.c.h.b16 %v1760
    %v2042 = vunpack.c.l.b16 %v1761
    %v2043 = vunpack.c.h.b16 %v1761
    %v2044 = vunpack.c.l.b16 %v1762
    %v2045 = vunpack.c.h.b16 %v1762
    %v2046 = vunpack.c.l.b16 %v1763
    %v2047 = vunpack.c.h.b16 %v1763
    %v2048 = vunpack.c.l.b16 %v1764
    %v2049 = vunpack.c.h.b16 %v1764
    %v2050 = vunpack.c.l.b16 %v1765
    %v2051 = vunpack.c.h.b16 %v1765
    %v2052 = vunpack.c.l.b16 %v1766
    %v2053 = vunpack.c.h.b16 %v1766
    %v2054 = vunpack.c.l.b16 %v1767
    %v2055 = vunpack.c.h.b16 %v1767
    %v2056 = vunpack.c.l.b16 %v1768
    %v2057 = vunpack.c.h.b16 %v1768
    %v2058 = vunpack.c.l.b16 %v1769
    %v2059 = vunpack.c.h.b16 %v1769
    %v2060 = vunpack.c.l.b16 %v1770
    %v2061 = vunpack.c.h.b16 %v1770
    %v2062 = vunpack.c.l.b16 %v1771
    %v2063 = vunpack.c.h.b16 %v1771
    %v2064 = vunpack.c.l.b16 %v1772
    %v2065 = vunpack.c.h.b16 %v1772
    %v2066 = vunpack.c.l.b16 %v1773
    %v2067 = vunpack.c.h.b16 %v1773
    %v2068 = vunpack.c.l.b16 %v1774
    %v2069 = vunpack.c.h.b16 %v1774
    %v2070 = vunpack.c.l.b16 %v1775
    %v2071 = vunpack.c.h.b16 %v1775
    %v2072 = vunpack.c.l.b16 %v1776
    %v2073 = vunpack.c.h.b16 %v1776
    %v2074 = vunpack.c.l.b16 %v1777
    %v2075 = vunpack.c.h.b16 %v1777
    %v2076 = vunpack.c.l.b16 %v1778
    %v2077 = vunpack.c.h.b16 %v1778
    %v2078 = vunpack.c.l.b16 %v1779
    %v2079 = vunpack.c.h.b16 %v1779
    %v2080 = vunpack.c.l.b16 %v1780
    %v2081 = vunpack.c.h.b16 %v1780
    %v2082 = vunpack.c.l.b16 %v1781
    %v2083 = vunpack.c.h.b16 %v1781
    %v2084 = vunpack.c.l.b16 %v1782
    %v2085 = vunpack.c.h.b16 %v1782
    %v2086 = vunpack.c.l.b16 %v1783
    %v2087 = vunpack.c.h.b16 %v1783
    %v2088 = vunpack.c.l.b16 %v1784
    %v2089 = vunpack.c.h.b16 %v1784
    %v2090 = vunpack.c.l.b16 %v1785
    %v2091 = vunpack.c.h.b16 %v1785
    %v2092 = vunpack.c.l.b16 %v1786
    %v2093 = vunpack.c.h.b16 %v1786
    %v2094 = vunpack.c.l.b16 %v1787
    %v2095 = vunpack.c.h.b16 %v1787
    %v2096 = vunpack.c.l.b16 %v1788
    %v2097 = vunpack.c.h.b16 %v1788
    %v2098 = vunpack.c.l.b16 %v1789
    %v2099 = vunpack.c.h.b16 %v1789
    %v2100 = vunpack.c.l.b16 %v1790
    %v2101 = vunpack.c.h.b16 %v1790
    %v2102 = vunpack.c.l.b16 %v1791
    %v2103 = vunpack.c.h.b16 %v1791
    %v2104 = vunpack.c.l.b16 %v1792
    %v2105 = vunpack.c.h.b16 %v1792
    %v2106 = vunpack.c.l.b16 %v1793
    %v2107 = vunpack.c.h.b16 %v1793
    %v2108 = vunpack.c.l.b16 %v1794
    %v2109 = vunpack.c.h.b16 %v1794
    %v2110 = vunpack.c.l.b16 %v1795
    %v2111 = vunpack.c.h.b16 %v1795
    %v2112 = vunpack.c.l.b16 %v1796
    %v2113 = vunpack.c.h.b16 %v1796
    %v2114 = vunpack.c.l.b16 %v1797
    %v2115 = vunpack.c.h.b16 %v1797
    %v2116 = vunpack.c.l.b16 %v1798
    %v2117 = vunpack.c.h.b16 %v1798
    %v2118 = vunpack.c.l.b16 %v1799
    %v2119 = vunpack.c.h.b16 %v1799
    %v2120 = vunpack.c.l.b16 %v1800
    %v2121 = vunpack.c.h.b16 %v1800
    %v2122 = vunpack.c.l.b16 %v1801
    %v2123 = vunpack.c.h.b16 %v1801
    %v2124 = vunpack.c.l.b16 %v1802
    %v2125 = vunpack.c.h.b16 %v1802
    %v2126 = vunpack.c.l.b16 %v1803
    %v2127 = vunpack.c.h.b16 %v1803
    %v2128 = vunpack.c.l.b16 %v1804
    %v2129 = vunpack.c.h.b16 %v1804
    %v2130 = vunpack.c.l.b16 %v1805
    %v2131 = vunpack.c.h.b16 %v1805
    %v2132 = vunpack.c.l.b16 %v1806
    %v2133 = vunpack.c.h.b16 %v1806
    %v2134 = vunpack.c.l.b16 %v1807
    %v2135 = vunpack.c.h.b16 %v1807
    %v2136 = vunpack.c.l.b16 %v1808
    %v2137 = vunpack.c.h.b16 %v1808
    %v2138 = vunpack.c.l.b16 %v1809
    %v2139 = vunpack.c.h.b16 %v1809
    %v2140 = vunpack.c.l.b16 %v1810
    %v2141 = vunpack.c.h.b16 %v1810
    %v2142 = vunpack.c.l.b16 %v1811
    %v2143 = vunpack.c.h.b16 %v1811
    %v2144 = vunpack.c.l.b16 %v1812
    %v2145 = vunpack.c.h.b16 %v1812
    %v2146 = vunpack.c.l.b16 %v1813
    %v2147 = vunpack.c.h.b16 %v1813
    %v2148 = vunpack.c.l.b16 %v1814
    %v2149 = vunpack.c.h.b16 %v1814
    %v2150 = vunpack.c.l.b16 %v1815
    %v2151 = vunpack.c.h.b16 %v1815
    %v2152 = vunpack.c.l.b16 %v1816
    %v2153 = vunpack.c.h.b16 %v1816
    %v2154 = vunpack.c.l.b16 %v1817
    %v2155 = vunpack.c.h.b16 %v1817
    %v2156 = vunpack.c.l.b16 %v1818
    %v2157 = vunpack.c.h.b16 %v1818
    %v2158 = vunpack.c.l.b16 %v1819
    %v2159 = vunpack.c.h.b16 %v1819
    %v2160 = vunpack.c.l.b16 %v1820
    %v2161 = vunpack.c.h.b16 %v1820
    %v2162 = vunpack.c.l.b16 %v1821
    %v2163 = vunpack.c.h.b16 %v1821
    %v2164 = vunpack.c.l.b16 %v1822
    %v2165 = vunpack.c.h.b16 %v1822
    %v2166 = vunpack.c.l.b16 %v1823
    %v2167 = vunpack.c.h.b16 %v1823
    %v2168 = vunpack.c.l.b16 %v1824
    %v2169 = vunpack.c.h.b16 %v1824
    %v2170 = vunpack.c.l.b16 %v1825
    %v2171 = vunpack.c.h.b16 %v1825
    %v2172 = vunpack.c.l.b16 %v1826
    %v2173 = vunpack.c.h.b16 %v1826
    %v2174 = vunpack.c.l.b16 %v1827
    %v2175 = vunpack.c.h.b16 %v1827
    %v2176 = vunpack.c.l.b16 %v1828
    %v2177 = vunpack.c.h.b16 %v1828
    %v2178 = vunpack.c.l.b16 %v1829
    %v2179 = vunpack.c.h.b16 %v1829
    %v2180 = vunpack.c.l.b16 %v1830
    %v2181 = vunpack.c.h.b16 %v1830
    %v2182 = vunpack.c.l.b16 %v1831
    %v2183 = vunpack.c.h.b16 %v1831
    %v2184 = vunpack.c.l.b16 %v1832
    %v2185 = vunpack.c.h.b16 %v1832
    %v2186 = vunpack.c.l.b16 %v1833
    %v2187 = vunpack.c.h.b16 %v1833
    %v2188 = vunpack.c.l.b16 %v1834
    %v2189 = vunpack.c.h.b16 %v1834
    %v2190 = vunpack.c.l.b16 %v1835
    %v2191 = vunpack.c.h.b16 %v1835
    %v2192 = vunpack.c.l.b16 %v1836
    %v2193 = vunpack.c.h.b16 %v1836
    %v2194 = vunpack.c.l.b16 %v1837
    %v2195 = vunpack.c.h.b16 %v1837
    %v2196 = vunpack.c.l.b16 %v1838
    %v2197 = vunpack.c.h.b16 %v1838
    %v2198 = vunpack.c.l.b16 %v1839
    %v2199 = vunpack.c.h.b16 %v1839
    %v2200 = vunpack.c.l.b16 %v1840
    %v2201 = vunpack.c.h.b16 %v1840
    %v2202 = vunpack.c.l.b16 %v1841
    %v2203 = vunpack.c.h.b16 %v1841
    %v2204 = vunpack.c.l.b16 %v1842
    %v2205 = vunpack.c.h.b16 %v1842
    %v2206 = vunpack.c.l.b16 %v1843
    %v2207 = vunpack.c.h.b16 %v1843
    %v2208 = vunpack.c.l.b16 %v1844
    %v2209 = vunpack.c.h.b16 %v1844
    %v2210 = vunpack.c.l.b16 %v1845
    %v2211 = vunpack.c.h.b16 %v1845
    %v2212 = vunpack.c.l.b16 %v1846
    %v2213 = vunpack.c.h.b16 %v1846
    %v2214 = vunpack.c.l.b16 %v1847
    %v2215 = vunpack.c.h.b16 %v1847
    %v2216 = vpack.c.b16 %v2006, %v1992
    %v2217 = vpack.c.b16 %v2007, %v1993
    %v2218 = vpack.c.b16 %v2008, %v1994
    %v2219 = vpack.c.b16 %v2009, %v1995
    %v2220 = vpack.c.b16 %v2010, %v1996
    %v2221 = vpack.c.b16 %v2011, %v1997
    %v2222 = vpack.c.b16 %v2012, %v1998
    %v2223 = vpack.c.b16 %v2013, %v1999
    %v2224 = vpack.c.b16 %v2014, %v2000
    %v2225 = vpack.c.b16 %v2015, %v2001
    %v2226 = vpack.c.b16 %v2016, %v2002
    %v2227 = vpack.c.b16 %v2017, %v2003
    %v2228 = vpack.c.b16 %v2018, %v2004
    %v2229 = vpack.c.b16 %v2019, %v2005
    %v2230 = vpack.c.b16 %v2034, %v2020
    %v2231 = vpack.c.b16 %v2035, %v2021
    %v2232 = vpack.c.b16 %v2036, %v2022
    %v2233 = vpack.c.b16 %v2037, %v2023
    %v2234 = vpack.c.b16 %v2038, %v2024
    %v2235 = vpack.c.b16 %v2039, %v2025
    %v2236 = vpack.c.b16 %v2040, %v2026
    %v2237 = vpack.c.b16 %v2041, %v2027
    %v2238 = vpack.c.b16 %v2042, %v2028
    %v2239 = vpack.c.b16 %v2043, %v2029
    %v2240 = vpack.c.b16 %v2044, %v2030
    %v2241 = vpack.c.b16 %v2045, %v2031
    %v2242 = vpack.c.b16 %v2046, %v2032
    %v2243 = vpack.c.b16 %v2047, %v2033
    %v2244 = vpack.c.b16 %v2062, %v2048
    %v2245 = vpack.c.b16 %v2063, %v2049
    %v2246 = vpack.c.b16 %v2064, %v2050
    %v2247 = vpack.c.b16 %v2065, %v2051
    %v2248 = vpack.c.b16 %v2066, %v2052
    %v2249 = vpack.c.b16 %v2067, %v2053
    %v2250 = vpack.c.b16 %v2068, %v2054
    %v2251 = vpack.c.b16 %v2069, %v2055
    %v2252 = vpack.c.b16 %v2070, %v2056
    %v2253 = vpack.c.b16 %v2071, %v2057
    %v2254 = vpack.c.b16 %v2072, %v2058
    %v2255 = vpack.c.b16 %v2073, %v2059
    %v2256 = vpack.c.b16 %v2074, %v2060
    %v2257 = vpack.c.b16 %v2075, %v2061
    %v2258 = vpack.c.b16 %v2090, %v2076
    %v2259 = vpack.c.b16 %v2091, %v2077
    %v2260 = vpack.c.b16 %v2092, %v2078
    %v2261 = vpack.c.b16 %v2093, %v2079
    %v2262 = vpack.c.b16 %v2094, %v2080
    %v2263 = vpack.c.b16 %v2095, %v2081
    %v2264 = vpack.c.b16 %v2096, %v2082
    %v2265 = vpack.c.b16 %v2097, %v2083
    %v2266 = vpack.c.b16 %v2098, %v2084
    %v2267 = vpack.c.b16 %v2099, %v2085
    %v2268 = vpack.c.b16 %v2100, %v2086
    %v2269 = vpack.c.b16 %v2101, %v2087
    %v2270 = vpack.c.b16 %v2102, %v2088
    %v2271 = vpack.c.b16 %v2103, %v2089
    %v2272 = vpack.c.b16 %v2118, %v2104
    %v2273 = vpack.c.b16 %v2119, %v2105
    %v2274 = vpack.c.b16 %v2120, %v2106
    %v2275 = vpack.c.b16 %v2121, %v2107
    %v2276 = vpack.c.b16 %v2122, %v2108
    %v2277 = vpack.c.b16 %v2123, %v2109
    %v2278 = vpack.c.b16 %v2124, %v2110
    %v2279 = vpack.c.b16 %v2125, %v2111
    %v2280 = vpack.c.b16 %v2126, %v2112
    %v2281 = vpack.c.b16 %v2127, %v2113
    %v2282 = vpack.c.b16 %v2128, %v2114
    %v2283 = vpack.c.b16 %v2129, %v2115
    %v2284 = vpack.c.b16 %v2130, %v2116
    %v2285 = vpack.c.b16 %v2131, %v2117
    %v2286 = vpack.c.b16 %v2146, %v2132
    %v2287 = vpack.c.b16 %v2147, %v2133
    %v2288 = vpack.c.b16 %v2148, %v2134
    %v2289 = vpack.c.b16 %v2149, %v2135
    %v2290 = vpack.c.b16 %v2150, %v2136
    %v2291 = vpack.c.b16 %v2151, %v2137
    %v2292 = vpack.c.b16 %v2152, %v2138
    %v2293 = vpack.c.b16 %v2153, %v2139
    %v2294 = vpack.c.b16 %v2154, %v2140
    %v2295 = vpack.c.b16 %v2155, %v2141
    %v2296 = vpack.c.b16 %v2156, %v2142
    %v2297 = vpack.c.b16 %v2157, %v2143
    %v2298 = vpack.c.b16 %v2158, %v2144
    %v2299 = vpack.c.b16 %v2159, %v2145
    %v2300 = vpack.c.b16 %v2174, %v2160
    %v2301 = vpack.c.b16 %v2175, %v2161
    %v2302 = vpack.c.b16 %v2176, %v2162
    %v2303 = vpack.c.b16 %v2177, %v2163
    %v2304 = vpack.c.b16 %v2178, %v2164
    %v2305 = vpack.c.b16 %v2179, %v2165
    %v2306 = vpack.c.b16 %v2180, %v2166
    %v2307 = vpack.c.b16 %v2181, %v2167
    %v2308 = vpack.c.b16 %v2182, %v2168
    %v2309 = vpack.c.b16 %v2183, %v2169
    %v2310 = vpack.c.b16 %v2184, %v2170
    %v2311 = vpack.c.b16 %v2185, %v2171
    %v2312 = vpack.c.b16 %v2186, %v2172
    %v2313 = vpack.c.b16 %v2187, %v2173
    %v2314 = vpack.c.b16 %v2202, %v2188
    %v2315 = vpack.c.b16 %v2203, %v2189
    %v2316 = vpack.c.b16 %v2204, %v2190
    %v2317 = vpack.c.b16 %v2205, %v2191
    %v2318 = vpack.c.b16 %v2206, %v2192
    %v2319 = vpack.c.b16 %v2207, %v2193
    %v2320 = vpack.c.b16 %v2208, %v2194
    %v2321 = vpack.c.b16 %v2209, %v2195
    %v2322 = vpack.c.b16 %v2210, %v2196
    %v2323 = vpack.c.b16 %v2211, %v2197
    %v2324 = vpack.c.b16 %v2212, %v2198
    %v2325 = vpack.c.b16 %v2213, %v2199
    %v2326 = vpack.c.b16 %v2214, %v2200
    %v2327 = vpack.c.b16 %v2215, %v2201
    %2440 = vmatpush.bf16.msra.mxu0 %v2314
    %2441 = vmatpush.bf16.msra.mxu0 %v2300
    %2442 = vmatpush.bf16.msra.mxu0 %v2286
    %2443 = vmatpush.bf16.msra.mxu0 %v2272
    %2444 = vmatpush.bf16.msra.mxu0 %v2258
    %2445 = vmatpush.bf16.msra.mxu0 %v2244
    %2446 = vmatpush.bf16.msra.mxu0 %v2230
    %2447 = vmatpush.bf16.msra.mxu0 %v2216
    %2448 = vmatmul.bf16.gmra.mxu0 %v1728
    %v2449 = vpop.f32.mrf.mxu0
    %v2450 = vadd.f32 %v1852, %v2449
    %v2451 = vpop.f32.mrf.mxu0
    %2452 = vdwg.mxu0
    %2453 = vmatpush.bf16.msra.mxu0 %v2315
    %2454 = vmatpush.bf16.msra.mxu0 %v2301
    %2455 = vmatpush.bf16.msra.mxu0 %v2287
    %2456 = vmatpush.bf16.msra.mxu0 %v2273
    %2457 = vmatpush.bf16.msra.mxu0 %v2259
    %2458 = vmatpush.bf16.msra.mxu0 %v2245
    %2459 = vmatpush.bf16.msra.mxu0 %v2231
    %2460 = vmatpush.bf16.msra.mxu0 %v2217
    %2461 = vmatmul.bf16.gmra.mxu0 %v1728
    %v2462 = vpop.f32.mrf.mxu0
    %v2463 = vadd.f32 %v1853, %v2462
    %v2464 = vpop.f32.mrf.mxu0
    %2465 = vdwg.mxu0
    %2466 = vmatpush.bf16.msra.mxu0 %v2316
    %2467 = vmatpush.bf16.msra.mxu0 %v2302
    %2468 = vmatpush.bf16.msra.mxu0 %v2288
    %2469 = vmatpush.bf16.msra.mxu0 %v2274
    %2470 = vmatpush.bf16.msra.mxu0 %v2260
    %2471 = vmatpush.bf16.msra.mxu0 %v2246
    %2472 = vmatpush.bf16.msra.mxu0 %v2232
    %2473 = vmatpush.bf16.msra.mxu0 %v2218
    %2474 = vmatmul.bf16.gmra.mxu0 %v1728
    %v2475 = vpop.f32.mrf.mxu0
    %v2476 = vadd.f32 %v1854, %v2475
    %v2477 = vpop.f32.mrf.mxu0
    %2478 = vdwg.mxu0
    %2479 = vmatpush.bf16.msra.mxu0 %v2317
    %2480 = vmatpush.bf16.msra.mxu0 %v2303
    %2481 = vmatpush.bf16.msra.mxu0 %v2289
    %2482 = vmatpush.bf16.msra.mxu0 %v2275
    %2483 = vmatpush.bf16.msra.mxu0 %v2261
    %2484 = vmatpush.bf16.msra.mxu0 %v2247
    %2485 = vmatpush.bf16.msra.mxu0 %v2233
    %2486 = vmatpush.bf16.msra.mxu0 %v2219
    %2487 = vmatmul.bf16.gmra.mxu0 %v1728
    %v2488 = vpop.f32.mrf.mxu0
    %v2489 = vadd.f32 %v1855, %v2488
    %v2490 = vpop.f32.mrf.mxu0
    %2491 = vdwg.mxu0
    %2492 = vmatpush.bf16.msra.mxu0 %v2318
    %2493 = vmatpush.bf16.msra.mxu0 %v2304
    %2494 = vmatpush.bf16.msra.mxu0 %v2290
    %2495 = vmatpush.bf16.msra.mxu0 %v2276
    %2496 = vmatpush.bf16.msra.mxu0 %v2262
    %2497 = vmatpush.bf16.msra.mxu0 %v2248
    %2498 = vmatpush.bf16.msra.mxu0 %v2234
    %2499 = vmatpush.bf16.msra.mxu0 %v2220
    %2500 = vmatmul.bf16.gmra.mxu0 %v1728
    %v2501 = vpop.f32.mrf.mxu0
    %v2502 = vadd.f32 %v1856, %v2501
    %v2503 = vpop.f32.mrf.mxu0
    %2504 = vdwg.mxu0
    %2505 = vmatpush.bf16.msra.mxu0 %v2319
    %2506 = vmatpush.bf16.msra.mxu0 %v2305
    %2507 = vmatpush.bf16.msra.mxu0 %v2291
    %2508 = vmatpush.bf16.msra.mxu0 %v2277
    %2509 = vmatpush.bf16.msra.mxu0 %v2263
    %2510 = vmatpush.bf16.msra.mxu0 %v2249
    %2511 = vmatpush.bf16.msra.mxu0 %v2235
    %2512 = vmatpush.bf16.msra.mxu0 %v2221
    %2513 = vmatmul.bf16.gmra.mxu0 %v1728
    %v2514 = vpop.f32.mrf.mxu0
    %v2515 = vadd.f32 %v1857, %v2514
    %v2516 = vpop.f32.mrf.mxu0
    %2517 = vdwg.mxu0
    %2518 = vmatpush.bf16.msra.mxu0 %v2320
    %2519 = vmatpush.bf16.msra.mxu0 %v2306
    %2520 = vmatpush.bf16.msra.mxu0 %v2292
    %2521 = vmatpush.bf16.msra.mxu0 %v2278
    %2522 = vmatpush.bf16.msra.mxu0 %v2264
    %2523 = vmatpush.bf16.msra.mxu0 %v2250
    %2524 = vmatpush.bf16.msra.mxu0 %v2236
    %2525 = vmatpush.bf16.msra.mxu0 %v2222
    %2526 = vmatmul.bf16.gmra.mxu0 %v1728
    %v2527 = vpop.f32.mrf.mxu0
    %v2528 = vadd.f32 %v1858, %v2527
    %v2529 = vpop.f32.mrf.mxu0
    %2530 = vdwg.mxu0
    %2531 = vmatpush.bf16.msra.mxu0 %v2321
    %2532 = vmatpush.bf16.msra.mxu0 %v2307
    %2533 = vmatpush.bf16.msra.mxu0 %v2293
    %2534 = vmatpush.bf16.msra.mxu0 %v2279
    %2535 = vmatpush.bf16.msra.mxu0 %v2265
    %2536 = vmatpush.bf16.msra.mxu0 %v2251
    %2537 = vmatpush.bf16.msra.mxu0 %v2237
    %2538 = vmatpush.bf16.msra.mxu0 %v2223
    %2539 = vmatmul.bf16.gmra.mxu0 %v1728
    %v2540 = vpop.f32.mrf.mxu0
    %v2541 = vadd.f32 %v1859, %v2540
    %v2542 = vpop.f32.mrf.mxu0
    %2543 = vdwg.mxu0
    %2544 = vmatpush.bf16.msra.mxu0 %v2322
    %2545 = vmatpush.bf16.msra.mxu0 %v2308
    %2546 = vmatpush.bf16.msra.mxu0 %v2294
    %2547 = vmatpush.bf16.msra.mxu0 %v2280
    %2548 = vmatpush.bf16.msra.mxu0 %v2266
    %2549 = vmatpush.bf16.msra.mxu0 %v2252
    %2550 = vmatpush.bf16.msra.mxu0 %v2238
    %2551 = vmatpush.bf16.msra.mxu0 %v2224
    %2552 = vmatmul.bf16.gmra.mxu0 %v1728
    %v2553 = vpop.f32.mrf.mxu0
    %v2554 = vadd.f32 %v1860, %v2553
    %v2555 = vpop.f32.mrf.mxu0
    %2556 = vdwg.mxu0
    %2557 = vmatpush.bf16.msra.mxu0 %v2323
    %2558 = vmatpush.bf16.msra.mxu0 %v2309
    %2559 = vmatpush.bf16.msra.mxu0 %v2295
    %2560 = vmatpush.bf16.msra.mxu0 %v2281
    %2561 = vmatpush.bf16.msra.mxu0 %v2267
    %2562 = vmatpush.bf16.msra.mxu0 %v2253
    %2563 = vmatpush.bf16.msra.mxu0 %v2239
    %2564 = vmatpush.bf16.msra.mxu0 %v2225
    %2565 = vmatmul.bf16.gmra.mxu0 %v1728
    %v2566 = vpop.f32.mrf.mxu0
    %v2567 = vadd.f32 %v1861, %v2566
    %v2568 = vpop.f32.mrf.mxu0
    %2569 = vdwg.mxu0
    %2570 = vmatpush.bf16.msra.mxu0 %v2324
    %2571 = vmatpush.bf16.msra.mxu0 %v2310
    %2572 = vmatpush.bf16.msra.mxu0 %v2296
    %2573 = vmatpush.bf16.msra.mxu0 %v2282
    %2574 = vmatpush.bf16.msra.mxu0 %v2268
    %2575 = vmatpush.bf16.msra.mxu0 %v2254
    %2576 = vmatpush.bf16.msra.mxu0 %v2240
    %2577 = vmatpush.bf16.msra.mxu0 %v2226
    %2578 = vmatmul.bf16.gmra.mxu0 %v1728
    %v2579 = vpop.f32.mrf.mxu0
    %v2580 = vadd.f32 %v1862, %v2579
    %v2581 = vpop.f32.mrf.mxu0
    %2582 = vdwg.mxu0
    %2583 = vmatpush.bf16.msra.mxu0 %v2325
    %2584 = vmatpush.bf16.msra.mxu0 %v2311
    %2585 = vmatpush.bf16.msra.mxu0 %v2297
    %2586 = vmatpush.bf16.msra.mxu0 %v2283
    %2587 = vmatpush.bf16.msra.mxu0 %v2269
    %2588 = vmatpush.bf16.msra.mxu0 %v2255
    %2589 = vmatpush.bf16.msra.mxu0 %v2241
    %2590 = vmatpush.bf16.msra.mxu0 %v2227
    %2591 = vmatmul.bf16.gmra.mxu0 %v1728
    %v2592 = vpop.f32.mrf.mxu0
    %v2593 = vadd.f32 %v1863, %v2592
    %v2594 = vpop.f32.mrf.mxu0
    %2595 = vdwg.mxu0
    %2596 = vmatpush.bf16.msra.mxu0 %v2326
    %2597 = vmatpush.bf16.msra.mxu0 %v2312
    %2598 = vmatpush.bf16.msra.mxu0 %v2298
    %2599 = vmatpush.bf16.msra.mxu0 %v2284
    %2600 = vmatpush.bf16.msra.mxu0 %v2270
    %2601 = vmatpush.bf16.msra.mxu0 %v2256
    %2602 = vmatpush.bf16.msra.mxu0 %v2242
    %2603 = vmatpush.bf16.msra.mxu0 %v2228
    %2604 = vmatmul.bf16.gmra.mxu0 %v1728
    %v2605 = vpop.f32.mrf.mxu0
    %v2606 = vadd.f32 %v1864, %v2605
    %v2607 = vpop.f32.mrf.mxu0
    %2608 = vdwg.mxu0
    %2609 = vmatpush.bf16.msra.mxu0 %v2327
    %2610 = vmatpush.bf16.msra.mxu0 %v2313
    %2611 = vmatpush.bf16.msra.mxu0 %v2299
    %2612 = vmatpush.bf16.msra.mxu0 %v2285
    %2613 = vmatpush.bf16.msra.mxu0 %v2271
    %2614 = vmatpush.bf16.msra.mxu0 %v2257
    %2615 = vmatpush.bf16.msra.mxu0 %v2243
    %2616 = vmatpush.bf16.msra.mxu0 %v2229
    %2617 = vmatmul.bf16.gmra.mxu0 %v1728
    %v2618 = vpop.f32.mrf.mxu0
    %v2619 = vadd.f32 %v1865, %v2618
    %v2620 = vpop.f32.mrf.mxu0
    %2621 = vdwg.mxu0
    %v2636 = vrot.slane %v2463, 6
    %v2637 = vrot.slane %v2476, 4
    %v2638 = vrot.slane %v2489, 2
    %v2639 = vrot.slane %v2515, 6
    %v2640 = vrot.slane %v2528, 4
    %v2641 = vrot.slane %v2541, 2
    %v2642 = vrot.slane %v2567, 6
    %v2643 = vrot.slane %v2580, 4
    %v2644 = vrot.slane %v2593, 2
    %v2645 = vrot.slane %v2619, 6
    %vm2646 = vcmask 1041408
    %v2647 = vsel %vm2646, %v2450, %v2636
    %vm2648 = vcmask 1045508
    %v2649 = vsel %vm2648, %v2637, %v2638
    %vm2650 = vcmask 1043456
    %v2651 = vsel %vm2650, %v2647, %v2649
    %v2652 = vsel %vm2646, %v2502, %v2639
    %v2653 = vsel %vm2648, %v2640, %v2641
    %v2654 = vsel %vm2650, %v2652, %v2653
    %v2655 = vsel %vm2646, %v2554, %v2642
    %v2656 = vsel %vm2648, %v2643, %v2644
    %v2657 = vsel %vm2650, %v2655, %v2656
    %v2658 = vsel %vm2646, %v2606, %v2645
    %2663 = vst [vmem:[#allocation11] sm:$0xff] %v2651
    %2664 = vst [vmem:[#allocation11 + $0x8] sm:$0xff] %v2654
    %2665 = vst [vmem:[#allocation11 + $0x10] sm:$0xff] %v2657
    %2666 = vst [vmem:[#allocation11 + $0x18] sm:$0xf] %v2658
    %v2677 = vsel %vm2646, %v2450, %v2636
    %v2678 = vsel %vm2650, %v2677, %v2637
    %v2679 = vsel %vm1529, %v2678, %v2638
    %v2680 = vsel %vm2646, %v2502, %v2639
    %v2681 = vsel %vm2650, %v2680, %v2640
    %v2682 = vsel %vm1529, %v2681, %v2641
    %v2683 = vsel %vm2646, %v2554, %v2642
    %v2684 = vsel %vm2650, %v2683, %v2643
    %v2685 = vsel %vm1529, %v2684, %v2644
    %v2686 = vsel %vm2646, %v2606, %v2645
    %v2687 = vpack.c.bf16 %v2682, %v2679
    %v2688 = vpack.c.bf16 %v2686, %v2685
    %v2689 = vld [vmem:[#allocation3] sm:$0xff]
    %v2690 = vld [vmem:[#allocation3 + $0x8] sm:$0xff]
    %v2691 = vld [vmem:[#allocation3 + $0x10] sm:$0xff]
    %v2692 = vld [vmem:[#allocation3 + $0x18] sm:$0xff]
    %v2693 = vld [vmem:[#allocation3 + $0x20] sm:$0xff]
    %v2694 = vld [vmem:[#allocation3 + $0x28] sm:$0xff]
    %v2695 = vld [vmem:[#allocation3 + $0x30] sm:$0xff]
    %v2696 = vld [vmem:[#allocation3 + $0x38] sm:$0xff]
    %v2697 = vld [vmem:[#allocation3 + $0x40] sm:$0xff]
    %v2698 = vld [vmem:[#allocation3 + $0x48] sm:$0xff]
    %v2699 = vld [vmem:[#allocation3 + $0x50] sm:$0xff]
    %v2700 = vld [vmem:[#allocation3 + $0x58] sm:$0xff]
    %v2701 = vld [vmem:[#allocation3 + $0x60] sm:$0xff]
    %v2702 = vld [vmem:[#allocation3 + $0x68] sm:$0xff]
    %v2703 = vld [vmem:[#allocation3 + $0x70] sm:$0xff]
    %v2704 = vld [vmem:[#allocation3 + $0x78] sm:$0xff]
    %v2705 = vld [vmem:[#allocation3 + $0x80] sm:$0xff]
    %v2706 = vld [vmem:[#allocation3 + $0x88] sm:$0xff]
    %v2707 = vld [vmem:[#allocation3 + $0x90] sm:$0xff]
    %v2708 = vld [vmem:[#allocation3 + $0x98] sm:$0xff]
    %v2709 = vld [vmem:[#allocation3 + $0xa0] sm:$0xff]
    %v2710 = vld [vmem:[#allocation3 + $0xa8] sm:$0xff]
    %v2711 = vld [vmem:[#allocation3 + $0xb0] sm:$0xff]
    %v2712 = vld [vmem:[#allocation3 + $0xb8] sm:$0xff]
    %v2713 = vld [vmem:[#allocation3 + $0xc0] sm:$0xff]
    %v2714 = vld [vmem:[#allocation3 + $0xc8] sm:$0xff]
    %v2715 = vld [vmem:[#allocation3 + $0xd0] sm:$0xff]
    %v2716 = vld [vmem:[#allocation3 + $0xd8] sm:$0xff]
    %v2717 = vld [vmem:[#allocation3 + $0xe0] sm:$0xff]
    %v2718 = vld [vmem:[#allocation3 + $0xe8] sm:$0xff]
    %v2719 = vld [vmem:[#allocation3 + $0xf0] sm:$0xff]
    %v2720 = vld [vmem:[#allocation3 + $0xf8] sm:$0xff]
    %v2753 = vunpack.c.l.b16 %v2689
    %v2754 = vunpack.c.h.b16 %v2689
    %v2755 = vunpack.c.l.b16 %v2690
    %v2756 = vunpack.c.h.b16 %v2690
    %v2757 = vunpack.c.l.b16 %v2691
    %v2758 = vunpack.c.h.b16 %v2691
    %v2759 = vunpack.c.l.b16 %v2692
    %v2760 = vunpack.c.h.b16 %v2692
    %v2761 = vunpack.c.l.b16 %v2693
    %v2762 = vunpack.c.h.b16 %v2693
    %v2763 = vunpack.c.l.b16 %v2694
    %v2764 = vunpack.c.h.b16 %v2694
    %v2765 = vunpack.c.l.b16 %v2695
    %v2766 = vunpack.c.h.b16 %v2695
    %v2767 = vunpack.c.l.b16 %v2696
    %v2768 = vunpack.c.h.b16 %v2696
    %v2769 = vunpack.c.l.b16 %v2697
    %v2770 = vunpack.c.h.b16 %v2697
    %v2771 = vunpack.c.l.b16 %v2698
    %v2772 = vunpack.c.h.b16 %v2698
    %v2773 = vunpack.c.l.b16 %v2699
    %v2774 = vunpack.c.h.b16 %v2699
    %v2775 = vunpack.c.l.b16 %v2700
    %v2776 = vunpack.c.h.b16 %v2700
    %v2777 = vunpack.c.l.b16 %v2701
    %v2778 = vunpack.c.h.b16 %v2701
    %v2779 = vunpack.c.l.b16 %v2702
    %v2780 = vunpack.c.h.b16 %v2702
    %v2781 = vunpack.c.l.b16 %v2703
    %v2782 = vunpack.c.h.b16 %v2703
    %v2783 = vunpack.c.l.b16 %v2704
    %v2784 = vunpack.c.h.b16 %v2704
    %v2785 = vunpack.c.l.b16 %v2705
    %v2786 = vunpack.c.h.b16 %v2705
    %v2787 = vunpack.c.l.b16 %v2706
    %v2788 = vunpack.c.h.b16 %v2706
    %v2789 = vunpack.c.l.b16 %v2707
    %v2790 = vunpack.c.h.b16 %v2707
    %v2791 = vunpack.c.l.b16 %v2708
    %v2792 = vunpack.c.h.b16 %v2708
    %v2793 = vunpack.c.l.b16 %v2709
    %v2794 = vunpack.c.h.b16 %v2709
    %v2795 = vunpack.c.l.b16 %v2710
    %v2796 = vunpack.c.h.b16 %v2710
    %v2797 = vunpack.c.l.b16 %v2711
    %v2798 = vunpack.c.h.b16 %v2711
    %v2799 = vunpack.c.l.b16 %v2712
    %v2800 = vunpack.c.h.b16 %v2712
    %v2801 = vunpack.c.l.b16 %v2713
    %v2802 = vunpack.c.h.b16 %v2713
    %v2803 = vunpack.c.l.b16 %v2714
    %v2804 = vunpack.c.h.b16 %v2714
    %v2805 = vunpack.c.l.b16 %v2715
    %v2806 = vunpack.c.h.b16 %v2715
    %v2807 = vunpack.c.l.b16 %v2716
    %v2808 = vunpack.c.h.b16 %v2716
    %v2809 = vunpack.c.l.b16 %v2717
    %v2810 = vunpack.c.h.b16 %v2717
    %v2811 = vunpack.c.l.b16 %v2718
    %v2812 = vunpack.c.h.b16 %v2718
    %v2813 = vunpack.c.l.b16 %v2719
    %v2814 = vunpack.c.h.b16 %v2719
    %v2815 = vunpack.c.l.b16 %v2720
    %v2816 = vunpack.c.h.b16 %v2720
    %v2817 = vpack.c.b16 %v2757, %v2753
    %v2818 = vpack.c.b16 %v2758, %v2754
    %v2819 = vpack.c.b16 %v2759, %v2755
    %v2820 = vpack.c.b16 %v2760, %v2756
    %v2821 = vpack.c.b16 %v2765, %v2761
    %v2822 = vpack.c.b16 %v2766, %v2762
    %v2823 = vpack.c.b16 %v2767, %v2763
    %v2824 = vpack.c.b16 %v2768, %v2764
    %v2825 = vpack.c.b16 %v2773, %v2769
    %v2826 = vpack.c.b16 %v2774, %v2770
    %v2827 = vpack.c.b16 %v2775, %v2771
    %v2828 = vpack.c.b16 %v2776, %v2772
    %v2829 = vpack.c.b16 %v2781, %v2777
    %v2830 = vpack.c.b16 %v2782, %v2778
    %v2831 = vpack.c.b16 %v2783, %v2779
    %v2832 = vpack.c.b16 %v2784, %v2780
    %v2833 = vpack.c.b16 %v2789, %v2785
    %v2834 = vpack.c.b16 %v2790, %v2786
    %v2835 = vpack.c.b16 %v2791, %v2787
    %v2836 = vpack.c.b16 %v2792, %v2788
    %v2837 = vpack.c.b16 %v2797, %v2793
    %v2838 = vpack.c.b16 %v2798, %v2794
    %v2839 = vpack.c.b16 %v2799, %v2795
    %v2840 = vpack.c.b16 %v2800, %v2796
    %v2841 = vpack.c.b16 %v2805, %v2801
    %v2842 = vpack.c.b16 %v2806, %v2802
    %v2843 = vpack.c.b16 %v2807, %v2803
    %v2844 = vpack.c.b16 %v2808, %v2804
    %v2845 = vpack.c.b16 %v2813, %v2809
    %v2846 = vpack.c.b16 %v2814, %v2810
    %v2847 = vpack.c.b16 %v2815, %v2811
    %v2848 = vpack.c.b16 %v2816, %v2812
    %2881 = vmatpush.bf16.msra.mxu0 %v2845
    %2882 = vmatpush.bf16.msra.mxu0 %v2841
    %2883 = vmatpush.bf16.msra.mxu0 %v2837
    %2884 = vmatpush.bf16.msra.mxu0 %v2833
    %2885 = vmatpush.bf16.msra.mxu0 %v2829
    %2886 = vmatpush.bf16.msra.mxu0 %v2825
    %2887 = vmatpush.bf16.msra.mxu0 %v2821
    %2888 = vmatpush.bf16.msra.mxu0 %v2817
    %2889 = vmatmul.bf16.gmra.mxu0 %v2687
    %v2890 = vpop.f32.mrf.mxu0
    %v2891 = vadd.f32 0.0, %v2890
    %v2892 = vpop.f32.mrf.mxu0
    %v2893 = vadd.f32 0.0, %v2892
    %2894 = vmatmul.bf16.gmra.mxu0 %v2688
    %v2895 = vpop.f32.mrf.mxu0
    %v2896 = vadd.f32 0.0, %v2895
    %v2897 = vpop.f32.mrf.mxu0
    %v2898 = vadd.f32 0.0, %v2897
    %2899 = vdwg.mxu0
    %2900 = vmatpush.bf16.msra.mxu0 %v2846
    %2901 = vmatpush.bf16.msra.mxu0 %v2842
    %2902 = vmatpush.bf16.msra.mxu0 %v2838
    %2903 = vmatpush.bf16.msra.mxu0 %v2834
    %2904 = vmatpush.bf16.msra.mxu0 %v2830
    %2905 = vmatpush.bf16.msra.mxu0 %v2826
    %2906 = vmatpush.bf16.msra.mxu0 %v2822
    %2907 = vmatpush.bf16.msra.mxu0 %v2818
    %2908 = vmatmul.bf16.gmra.mxu0 %v2687
    %v2909 = vpop.f32.mrf.mxu0
    %v2910 = vadd.f32 0.0, %v2909
    %v2911 = vpop.f32.mrf.mxu0
    %v2912 = vadd.f32 0.0, %v2911
    %2913 = vmatmul.bf16.gmra.mxu0 %v2688
    %v2914 = vpop.f32.mrf.mxu0
    %v2915 = vadd.f32 0.0, %v2914
    %v2916 = vpop.f32.mrf.mxu0
    %v2917 = vadd.f32 0.0, %v2916
    %2918 = vdwg.mxu0
    %2919 = vmatpush.bf16.msra.mxu0 %v2847
    %2920 = vmatpush.bf16.msra.mxu0 %v2843
    %2921 = vmatpush.bf16.msra.mxu0 %v2839
    %2922 = vmatpush.bf16.msra.mxu0 %v2835
    %2923 = vmatpush.bf16.msra.mxu0 %v2831
    %2924 = vmatpush.bf16.msra.mxu0 %v2827
    %2925 = vmatpush.bf16.msra.mxu0 %v2823
    %2926 = vmatpush.bf16.msra.mxu0 %v2819
    %2927 = vmatmul.bf16.gmra.mxu0 %v2687
    %v2928 = vpop.f32.mrf.mxu0
    %v2929 = vadd.f32 0.0, %v2928
    %v2930 = vpop.f32.mrf.mxu0
    %v2931 = vadd.f32 0.0, %v2930
    %2932 = vmatmul.bf16.gmra.mxu0 %v2688
    %v2933 = vpop.f32.mrf.mxu0
    %v2934 = vadd.f32 0.0, %v2933
    %v2935 = vpop.f32.mrf.mxu0
    %v2936 = vadd.f32 0.0, %v2935
    %2937 = vdwg.mxu0
    %2938 = vmatpush.bf16.msra.mxu0 %v2848
    %2939 = vmatpush.bf16.msra.mxu0 %v2844
    %2940 = vmatpush.bf16.msra.mxu0 %v2840
    %2941 = vmatpush.bf16.msra.mxu0 %v2836
    %2942 = vmatpush.bf16.msra.mxu0 %v2832
    %2943 = vmatpush.bf16.msra.mxu0 %v2828
    %2944 = vmatpush.bf16.msra.mxu0 %v2824
    %2945 = vmatpush.bf16.msra.mxu0 %v2820
    %2946 = vmatmul.bf16.gmra.mxu0 %v2687
    %v2947 = vpop.f32.mrf.mxu0
    %v2948 = vadd.f32 0.0, %v2947
    %v2949 = vpop.f32.mrf.mxu0
    %v2950 = vadd.f32 0.0, %v2949
    %2951 = vmatmul.bf16.gmra.mxu0 %v2688
    %v2952 = vpop.f32.mrf.mxu0
    %v2953 = vadd.f32 0.0, %v2952
    %v2954 = vpop.f32.mrf.mxu0
    %v2955 = vadd.f32 0.0, %v2954
    %2956 = vdwg.mxu0
    %2957 = vst [vmem:[%s15] sm:$0xff] %v2891
    %2958 = vst [vmem:[%s15 + $0x8] sm:$0xff] %v2910
    %2959 = vst [vmem:[%s15 + $0x10] sm:$0xff] %v2929
    %2960 = vst [vmem:[%s15 + $0x18] sm:$0xff] %v2948
    %2961 = vst [vmem:[%s15 + $0x20] sm:$0xff] %v2893
    %2962 = vst [vmem:[%s15 + $0x28] sm:$0xff] %v2912
    %2963 = vst [vmem:[%s15 + $0x30] sm:$0xff] %v2931
    %2964 = vst [vmem:[%s15 + $0x38] sm:$0xff] %v2950
    %2965 = vst [vmem:[%s15 + $0x40] sm:$0xff] %v2896
    %2966 = vst [vmem:[%s15 + $0x48] sm:$0xff] %v2915
    %2967 = vst [vmem:[%s15 + $0x50] sm:$0xff] %v2934
    %2968 = vst [vmem:[%s15 + $0x58] sm:$0xff] %v2953
    %2969 = vst [vmem:[%s15 + $0x60] sm:$0xf] %v2898
    %2970 = vst [vmem:[%s15 + $0x68] sm:$0xf] %v2917
    %2971 = vst [vmem:[%s15 + $0x70] sm:$0xf] %v2936
    %2972 = vst [vmem:[%s15 + $0x78] sm:$0xf] %v2955
    // Predicated region
    $region85: #{video_codebook_forward.1} parent=1 // pred_check
      _
    $region86: #{video_codebook_forward.1} parent=1 // pred_check_branch
      %2974 = sbr.rel (0) target = $region88
    $region87: #{video_codebook_forward.1} parent=1 // pred_region
      %2976 = vsyncadd [#allocation7], 0
      %s2978 = sshll.u32 [#allocation11], 4
      %s2979 = int_to_ptr.vmem [resolvable:$true] %s2978
      %s2980 = sshll.u32 %s14, 4
      %s2981 = int_to_ptr.hbm [resolvable:$true] %s2980
      %2983 = dma.vmem_to_hbm [thread:$0]  %s2979, 448, %s2981, [#allocation7]
    $region88: #{video_codebook_forward.1} parent=1 // pred_fallthru
      _
    // Predicated region
    $region89: #{video_codebook_forward.1} parent=1 // pred_check
      _
    $region90: #{video_codebook_forward.1} parent=1 // pred_check_branch
      %2985 = sbr.rel (0) target = $region92
    $region91: #{video_codebook_forward.1} parent=1 // pred_region
      _
    $region92: #{video_codebook_forward.1} parent=1 // pred_fallthru
      _
    // Predicated region
    $region93: #{video_codebook_forward.1} parent=1 // pred_check
      _
    $region94: #{video_codebook_forward.1} parent=1 // pred_check_branch
      %2987 = sbr.rel (0) target = $region96
    $region95: #{video_codebook_forward.1} parent=1 // pred_region
      %2989 = dma.done [#allocation7], 448
    $region96: #{video_codebook_forward.1} parent=1 // pred_fallthru
      _
    // Predicated region
    $region97: #{video_codebook_forward.1} parent=1 // pred_check
      _
    $region98: #{video_codebook_forward.1} parent=1 // pred_check_branch
      %2991 = sbr.rel (0) target = $region100
    $region99: #{video_codebook_forward.1} parent=1 // pred_region
      _
    $region100: #{video_codebook_forward.1} parent=1 // pred_fallthru
      _
    %2992 = vsyncpa [#allocation6], 1
    %2993 = vsyncpa [#allocation9], 1
    %2994 = vsyncpa [#allocation7], 1
  %2995 = vsyncmov [#allocation4]
  %s2996 = vpop.sfrf %2995
  %p2997 = scmp.eq.s32.totalorder %s2996, 0
  %p2998 = pneg %p2997
  %3000 = shalt.err (%p2998)
  %s3001 = scalar_lea.sflag [#allocation4], 1
  %3002 = vsyncmov %s3001
  %s3003 = vpop.sfrf %3002
  %p3004 = scmp.eq.s32.totalorder %s3003, 0
  %p3005 = pneg %p3004
  %3007 = shalt.err (%p3005)

</llo_original>
